<compile_context>
chip_gen: v5e
topology: v5e:2x2
jax: 0.10.0
libtpu: 0.0.40
codegen_flags: <defaults>
</compile_context>

<pallas_src>
import functools

import jax
import jax.numpy as jnp
import numpy as np
from jax.experimental import pallas as pl
from jax.experimental.pallas import tpu as pltpu


# ----------------------------------------------------------------------------
# Pallas kernel: direct fused full-convolution for NB batch elements.
#   w_ref    : SMEM (Kdim,)            fused, spatially-flipped weights,
#                                      flattened in (r, s, c) order
#   x_ref    : VMEM (NB, Cin, Hp, Wp)  zero-padded input (pad = Keff-1)
#   bmap_ref : VMEM (Hout, Wout)       precomputed spatially-varying bias map
#   o_ref    : VMEM (NB, Hout, Wout)   output block
# ----------------------------------------------------------------------------
def _decoder_kernel(w_ref, x_ref, bmap_ref, o_ref, *, cin, keff, hout, wout):
    acc = jnp.zeros(o_ref.shape, jnp.float32)
    # out[n, p, q] = sum_{r,s,c} w[(r*Keff+s)*Cin+c] * xpad[n, c, p+r, q+s]
    # 100 scalar-from-SMEM * VMEM-window FMAs on the VPU; no MXU, no im2col.
    for r in range(keff):
        for s in range(keff):
            for c in range(cin):
                w = w_ref[(r * keff + s) * cin + c]
                acc = acc + w * x_ref[:, c, r:r + hout, s:s + wout]
    o_ref[...] = acc + bmap_ref[...][None, :, :]


# ----------------------------------------------------------------------------
# One-time parameter composition (hoisted out of the per-input hot path).
# ----------------------------------------------------------------------------
def prepare_decoder_params(params, H, W):
    """Compose the two ConvTranspose2d layers into a single effective one.

    Returns (wflat, bmap, keff) where
      wflat : (Keff*Keff*Cin,)  flipped, (r, s, c)-ordered fused weights
      bmap  : (Hout, Wout)      spatially-varying bias map (b1 through layer2, + b2)
    """
    w1 = jnp.asarray(params["w1"], jnp.float32)   # (Cin, C1, K1, K1)
    b1 = jnp.asarray(params["b1"], jnp.float32)   # (C1,)
    w2 = jnp.asarray(params["w2"], jnp.float32)   # (C1, 1, K2, K2)
    b2 = jnp.asarray(params["b2"], jnp.float32)   # (1,)

    cin, c1, k1, _ = w1.shape
    c1b, c2, k2, _ = w2.shape
    assert c1 == c1b and c2 == 1
    keff = k1 + k2 - 1
    h1, w1out = H + k1 - 1, W + k1 - 1            # layer-1 output extent
    hout, wout = h1 + k2 - 1, w1out + k2 - 1      # final output extent

    # Effective kernel: channel-contracted full 2-D convolution of w1 and w2.
    #   w_eff[ic, 0, u, v] = sum_{c1, i, j} w1[ic, c1, i, j] * w2[c1, 0, u-i, v-j]
    w_eff = jnp.zeros((cin, c2, keff, keff), jnp.float32)
    for i in range(k1):
        for j in range(k1):
            w_eff = w_eff.at[:, :, i:i + k2, j:j + k2].add(
                jnp.einsum("ic,cokl->iokl", w1[:, :, i, j], w2))

    # Flipped weights flattened in (r, s, c) order -> matches the kernel loop.
    wflat = (jnp.flip(w_eff, axis=(2, 3))
             .transpose(1, 2, 3, 0)
             .reshape(keff * keff * cin))

    # Spatially-varying bias map: constant-b1 field (support H1 x W1) pushed
    # through layer 2's transposed conv, plus b2 (exact border handling).
    s2 = jnp.einsum("c,ckl->kl", b1, w2[:, 0, :, :])          # (K2, K2)
    bfield = jnp.zeros((hout, wout), jnp.float32)
    for ki in range(k2):
        for kj in range(k2):
            bfield = bfield.at[ki:ki + h1, kj:kj + w1out].add(s2[ki, kj])
    bmap = bfield + b2[0]                                     # (Hout, Wout)

    return wflat, bmap, keff


# ----------------------------------------------------------------------------
# Per-input forward: zero-pad (tiny) + single batched Pallas call.
# ----------------------------------------------------------------------------
@functools.partial(jax.jit, static_argnames=("keff",))
def decoder_forward(x_nchw, wflat, bmap, *, keff):
    N, cin, H, W = x_nchw.shape
    pad = keff - 1
    hout, wout = H + pad, W + pad
    hp, wp = H + 2 * pad, W + 2 * pad
    kdim = keff * keff * cin
    assert wflat.shape == (kdim,) and bmap.shape == (hout, wout)

    # NB elements per grid step: amortize per-step overhead, but keep the grid
    # >= 2 steps when N >= 2 so both v7x TensorCores get work.
    nb = max(1, min(8, (N + 1) // 2))
    n_pad = ((N + nb - 1) // nb) * nb

    # Only the (Keff-1)-padded input is materialized (~11 KB/element); no
    # im2col blow-up, no patch HBM round-trip.
    xp = jnp.pad(x_nchw.astype(jnp.float32),
                 ((0, n_pad - N), (0, 0), (pad, pad), (pad, pad)))

    flops = 2 * n_pad * kdim * hout * wout
    bytes_accessed = 4 * (xp.size + wflat.size + bmap.size + n_pad * hout * wout)

    kernel = functools.partial(_decoder_kernel, cin=cin, keff=keff,
                               hout=hout, wout=wout)

    out = pl.pallas_call(
        kernel,
        out_shape=jax.ShapeDtypeStruct((n_pad, hout, wout), jnp.float32),
        grid=(n_pad // nb,),
        in_specs=[
            pl.BlockSpec(memory_space=pltpu.MemorySpace.SMEM),          # wflat
            pl.BlockSpec((nb, cin, hp, wp), lambda g: (g, 0, 0, 0)),    # padded x
            pl.BlockSpec((hout, wout), lambda g: (0, 0)),               # bias map
        ],
        out_specs=pl.BlockSpec((nb, hout, wout), lambda g: (g, 0, 0)),
        compiler_params=pltpu.CompilerParams(
            dimension_semantics=("parallel",)),
        cost_estimate=pl.CostEstimate(flops=flops, transcendentals=0,
                                      bytes_accessed=bytes_accessed),
    )(wflat, xp, bmap)

    return out[:N].reshape(N, 1, hout, wout)                  # NCHW output


# ----------------------------------------------------------------------------
# NumPy reference of the *unfused* PyTorch module (semantic check).
# ----------------------------------------------------------------------------
def _ref_conv_transpose_nchw(x, w, b):
    x = np.asarray(x); w = np.asarray(w); b = np.asarray(b)
    N, Cin, H, W = x.shape
    _, Cout, K, _ = w.shape
    out = np.zeros((N, Cout, H + K - 1, W + K - 1), np.float32)
    for ki in range(K):
        for kj in range(K):
            out[:, :, ki:ki + H, kj:kj + W] += np.einsum(
                "nihw,io->nohw", x, w[:, :, ki, kj])
    out += b[None, :, None, None]
    return out


if __name__ == "__main__":
    # Module hyperparameters (small, consistent with the PyTorch __init__).
    in_channel, out_channel = 4, 8
    kernel_size_1, kernel_size_2 = 3, 3
    N, H, W = 2, 16, 16

    key = jax.random.PRNGKey(0)
    k1, k2, k3, k4, k5 = jax.random.split(key, 5)

    # PyTorch ConvTranspose2d weight layout: (in_channels, out_channels, kH, kW)
    params = {
        "w1": jax.random.normal(k1, (in_channel, out_channel,
                                     kernel_size_1, kernel_size_1),
                                jnp.float32) * 0.1,
        "b1": jax.random.normal(k2, (out_channel,), jnp.float32) * 0.1,
        "w2": jax.random.normal(k3, (out_channel, 1,
                                     kernel_size_2, kernel_size_2),
                                jnp.float32) * 0.1,
        "b2": jax.random.normal(k4, (1,), jnp.float32) * 0.1,
    }
    x = jax.random.normal(k5, (N, in_channel, H, W), jnp.float32)

    # One-time param composition (hoisted out of the hot path).
    wflat, bmap, keff = prepare_decoder_params(params, H, W)

    y = decoder_forward(x, wflat, bmap, keff=keff)
    y = jax.block_until_ready(y)

    # Cross-check against the unfused two-layer ConvTranspose2d reference.
    ref = _ref_conv_transpose_nchw(x, params["w1"], params["b1"])
    ref = _ref_conv_transpose_nchw(ref, params["w2"], params["b2"])
    assert y.shape == ref.shape == (N, 1, H + kernel_size_1 + kernel_size_2 - 2,
                                    W + kernel_size_1 + kernel_size_2 - 2)
    np.testing.assert_allclose(np.asarray(y), ref, rtol=1e-4, atol=1e-4)

    print("KERNEL_OK")
</pallas_src>

<mosaic_0001>
module attributes {stable_mosaic.version = 11 : i64} {
  func.func @_decoder_kernel(%arg0: i32, %arg1: memref<100xf32, #tpu.memory_space<smem>>, %arg2: memref<1x4x24x24xf32, #tpu.memory_space<vmem>>, %arg3: memref<20x20xf32, #tpu.memory_space<vmem>>, %arg4: memref<1x20x20xf32, #tpu.memory_space<vmem>>) attributes {dimension_semantics = [#tpu.dimension_semantics<parallel>], iteration_bounds = array<i64: 2>, scalar_prefetch = 0 : i64, scratch_operands = 0 : i64, tpu.core_type = #tpu.core_type<tc>, window_params = [{transform_indices = @transform_0, window_bounds = array<i64: 100>}, {transform_indices = @transform_1, window_bounds = array<i64: 1, 4, 24, 24>}, {pipeline_mode = #tpu.pipeline_mode<synchronous>, transform_indices = @transform_2, window_bounds = array<i64: 20, 20>}, {transform_indices = @transform_3, window_bounds = array<i64: 1, 20, 20>}]} {
    %cst = arith.constant 0.000000e+00 : f32
    %0 = vector.broadcast %cst : f32 to vector<1x20x20xf32>
    %c0 = arith.constant 0 : index
    %1 = memref.load %arg1[%c0] : memref<100xf32, #tpu.memory_space<smem>>
    %c0_0 = arith.constant 0 : index
    %c0_1 = arith.constant 0 : index
    %c0_2 = arith.constant 0 : index
    %c0_3 = arith.constant 0 : index
    %2 = vector.load %arg2[%c0_0, %c0_1, %c0_2, %c0_3] : memref<1x4x24x24xf32, #tpu.memory_space<vmem>>, vector<1x1x20x20xf32>
    %3 = vector.shape_cast %2 : vector<1x1x20x20xf32> to vector<1x20x20xf32>
    %4 = vector.broadcast %1 : f32 to vector<1x20x20xf32>
    %5 = arith.mulf %4, %3 : vector<1x20x20xf32>
    %6 = arith.addf %0, %5 : vector<1x20x20xf32>
    %c1 = arith.constant 1 : index
    %7 = memref.load %arg1[%c1] : memref<100xf32, #tpu.memory_space<smem>>
    %c0_4 = arith.constant 0 : index
    %c1_5 = arith.constant 1 : index
    %c0_6 = arith.constant 0 : index
    %c0_7 = arith.constant 0 : index
    %8 = vector.load %arg2[%c0_4, %c1_5, %c0_6, %c0_7] : memref<1x4x24x24xf32, #tpu.memory_space<vmem>>, vector<1x1x20x20xf32>
    %9 = vector.shape_cast %8 : vector<1x1x20x20xf32> to vector<1x20x20xf32>
    %10 = vector.broadcast %7 : f32 to vector<1x20x20xf32>
    %11 = arith.mulf %10, %9 : vector<1x20x20xf32>
    %12 = arith.addf %6, %11 : vector<1x20x20xf32>
    %c2 = arith.constant 2 : index
    %13 = memref.load %arg1[%c2] : memref<100xf32, #tpu.memory_space<smem>>
    %c0_8 = arith.constant 0 : index
    %c2_9 = arith.constant 2 : index
    %c0_10 = arith.constant 0 : index
    %c0_11 = arith.constant 0 : index
    %14 = vector.load %arg2[%c0_8, %c2_9, %c0_10, %c0_11] : memref<1x4x24x24xf32, #tpu.memory_space<vmem>>, vector<1x1x20x20xf32>
    %15 = vector.shape_cast %14 : vector<1x1x20x20xf32> to vector<1x20x20xf32>
    %16 = vector.broadcast %13 : f32 to vector<1x20x20xf32>
    %17 = arith.mulf %16, %15 : vector<1x20x20xf32>
    %18 = arith.addf %12, %17 : vector<1x20x20xf32>
    %c3 = arith.constant 3 : index
    %19 = memref.load %arg1[%c3] : memref<100xf32, #tpu.memory_space<smem>>
    %c0_12 = arith.constant 0 : index
    %c3_13 = arith.constant 3 : index
    %c0_14 = arith.constant 0 : index
    %c0_15 = arith.constant 0 : index
    %20 = vector.load %arg2[%c0_12, %c3_13, %c0_14, %c0_15] : memref<1x4x24x24xf32, #tpu.memory_space<vmem>>, vector<1x1x20x20xf32>
    %21 = vector.shape_cast %20 : vector<1x1x20x20xf32> to vector<1x20x20xf32>
    %22 = vector.broadcast %19 : f32 to vector<1x20x20xf32>
    %23 = arith.mulf %22, %21 : vector<1x20x20xf32>
    %24 = arith.addf %18, %23 : vector<1x20x20xf32>
    %c4 = arith.constant 4 : index
    %25 = memref.load %arg1[%c4] : memref<100xf32, #tpu.memory_space<smem>>
    %c0_16 = arith.constant 0 : index
    %c0_17 = arith.constant 0 : index
    %c0_18 = arith.constant 0 : index
    %c1_19 = arith.constant 1 : index
    %26 = vector.load %arg2[%c0_16, %c0_17, %c0_18, %c1_19] : memref<1x4x24x24xf32, #tpu.memory_space<vmem>>, vector<1x1x20x20xf32>
    %27 = vector.shape_cast %26 : vector<1x1x20x20xf32> to vector<1x20x20xf32>
    %28 = vector.broadcast %25 : f32 to vector<1x20x20xf32>
    %29 = arith.mulf %28, %27 : vector<1x20x20xf32>
    %30 = arith.addf %24, %29 : vector<1x20x20xf32>
    %c5 = arith.constant 5 : index
    %31 = memref.load %arg1[%c5] : memref<100xf32, #tpu.memory_space<smem>>
    %c0_20 = arith.constant 0 : index
    %c1_21 = arith.constant 1 : index
    %c0_22 = arith.constant 0 : index
    %c1_23 = arith.constant 1 : index
    %32 = vector.load %arg2[%c0_20, %c1_21, %c0_22, %c1_23] : memref<1x4x24x24xf32, #tpu.memory_space<vmem>>, vector<1x1x20x20xf32>
    %33 = vector.shape_cast %32 : vector<1x1x20x20xf32> to vector<1x20x20xf32>
    %34 = vector.broadcast %31 : f32 to vector<1x20x20xf32>
    %35 = arith.mulf %34, %33 : vector<1x20x20xf32>
    %36 = arith.addf %30, %35 : vector<1x20x20xf32>
    %c6 = arith.constant 6 : index
    %37 = memref.load %arg1[%c6] : memref<100xf32, #tpu.memory_space<smem>>
    %c0_24 = arith.constant 0 : index
    %c2_25 = arith.constant 2 : index
    %c0_26 = arith.constant 0 : index
    %c1_27 = arith.constant 1 : index
    %38 = vector.load %arg2[%c0_24, %c2_25, %c0_26, %c1_27] : memref<1x4x24x24xf32, #tpu.memory_space<vmem>>, vector<1x1x20x20xf32>
    %39 = vector.shape_cast %38 : vector<1x1x20x20xf32> to vector<1x20x20xf32>
    %40 = vector.broadcast %37 : f32 to vector<1x20x20xf32>
    %41 = arith.mulf %40, %39 : vector<1x20x20xf32>
    %42 = arith.addf %36, %41 : vector<1x20x20xf32>
    %c7 = arith.constant 7 : index
    %43 = memref.load %arg1[%c7] : memref<100xf32, #tpu.memory_space<smem>>
    %c0_28 = arith.constant 0 : index
    %c3_29 = arith.constant 3 : index
    %c0_30 = arith.constant 0 : index
    %c1_31 = arith.constant 1 : index
    %44 = vector.load %arg2[%c0_28, %c3_29, %c0_30, %c1_31] : memref<1x4x24x24xf32, #tpu.memory_space<vmem>>, vector<1x1x20x20xf32>
    %45 = vector.shape_cast %44 : vector<1x1x20x20xf32> to vector<1x20x20xf32>
    %46 = vector.broadcast %43 : f32 to vector<1x20x20xf32>
    %47 = arith.mulf %46, %45 : vector<1x20x20xf32>
    %48 = arith.addf %42, %47 : vector<1x20x20xf32>
    %c8 = arith.constant 8 : index
    %49 = memref.load %arg1[%c8] : memref<100xf32, #tpu.memory_space<smem>>
    %c0_32 = arith.constant 0 : index
    %c0_33 = arith.constant 0 : index
    %c0_34 = arith.constant 0 : index
    %c2_35 = arith.constant 2 : index
    %50 = vector.load %arg2[%c0_32, %c0_33, %c0_34, %c2_35] : memref<1x4x24x24xf32, #tpu.memory_space<vmem>>, vector<1x1x20x20xf32>
    %51 = vector.shape_cast %50 : vector<1x1x20x20xf32> to vector<1x20x20xf32>
    %52 = vector.broadcast %49 : f32 to vector<1x20x20xf32>
    %53 = arith.mulf %52, %51 : vector<1x20x20xf32>
    %54 = arith.addf %48, %53 : vector<1x20x20xf32>
    %c9 = arith.constant 9 : index
    %55 = memref.load %arg1[%c9] : memref<100xf32, #tpu.memory_space<smem>>
    %c0_36 = arith.constant 0 : index
    %c1_37 = arith.constant 1 : index
    %c0_38 = arith.constant 0 : index
    %c2_39 = arith.constant 2 : index
    %56 = vector.load %arg2[%c0_36, %c1_37, %c0_38, %c2_39] : memref<1x4x24x24xf32, #tpu.memory_space<vmem>>, vector<1x1x20x20xf32>
    %57 = vector.shape_cast %56 : vector<1x1x20x20xf32> to vector<1x20x20xf32>
    %58 = vector.broadcast %55 : f32 to vector<1x20x20xf32>
    %59 = arith.mulf %58, %57 : vector<1x20x20xf32>
    %60 = arith.addf %54, %59 : vector<1x20x20xf32>
    %c10 = arith.constant 10 : index
    %61 = memref.load %arg1[%c10] : memref<100xf32, #tpu.memory_space<smem>>
    %c0_40 = arith.constant 0 : index
    %c2_41 = arith.constant 2 : index
    %c0_42 = arith.constant 0 : index
    %c2_43 = arith.constant 2 : index
    %62 = vector.load %arg2[%c0_40, %c2_41, %c0_42, %c2_43] : memref<1x4x24x24xf32, #tpu.memory_space<vmem>>, vector<1x1x20x20xf32>
    %63 = vector.shape_cast %62 : vector<1x1x20x20xf32> to vector<1x20x20xf32>
    %64 = vector.broadcast %61 : f32 to vector<1x20x20xf32>
    %65 = arith.mulf %64, %63 : vector<1x20x20xf32>
    %66 = arith.addf %60, %65 : vector<1x20x20xf32>
    %c11 = arith.constant 11 : index
    %67 = memref.load %arg1[%c11] : memref<100xf32, #tpu.memory_space<smem>>
    %c0_44 = arith.constant 0 : index
    %c3_45 = arith.constant 3 : index
    %c0_46 = arith.constant 0 : index
    %c2_47 = arith.constant 2 : index
    %68 = vector.load %arg2[%c0_44, %c3_45, %c0_46, %c2_47] : memref<1x4x24x24xf32, #tpu.memory_space<vmem>>, vector<1x1x20x20xf32>
    %69 = vector.shape_cast %68 : vector<1x1x20x20xf32> to vector<1x20x20xf32>
    %70 = vector.broadcast %67 : f32 to vector<1x20x20xf32>
    %71 = arith.mulf %70, %69 : vector<1x20x20xf32>
    %72 = arith.addf %66, %71 : vector<1x20x20xf32>
    %c12 = arith.constant 12 : index
    %73 = memref.load %arg1[%c12] : memref<100xf32, #tpu.memory_space<smem>>
    %c0_48 = arith.constant 0 : index
    %c0_49 = arith.constant 0 : index
    %c0_50 = arith.constant 0 : index
    %c3_51 = arith.constant 3 : index
    %74 = vector.load %arg2[%c0_48, %c0_49, %c0_50, %c3_51] : memref<1x4x24x24xf32, #tpu.memory_space<vmem>>, vector<1x1x20x20xf32>
    %75 = vector.shape_cast %74 : vector<1x1x20x20xf32> to vector<1x20x20xf32>
    %76 = vector.broadcast %73 : f32 to vector<1x20x20xf32>
    %77 = arith.mulf %76, %75 : vector<1x20x20xf32>
    %78 = arith.addf %72, %77 : vector<1x20x20xf32>
    %c13 = arith.constant 13 : index
    %79 = memref.load %arg1[%c13] : memref<100xf32, #tpu.memory_space<smem>>
    %c0_52 = arith.constant 0 : index
    %c1_53 = arith.constant 1 : index
    %c0_54 = arith.constant 0 : index
    %c3_55 = arith.constant 3 : index
    %80 = vector.load %arg2[%c0_52, %c1_53, %c0_54, %c3_55] : memref<1x4x24x24xf32, #tpu.memory_space<vmem>>, vector<1x1x20x20xf32>
    %81 = vector.shape_cast %80 : vector<1x1x20x20xf32> to vector<1x20x20xf32>
    %82 = vector.broadcast %79 : f32 to vector<1x20x20xf32>
    %83 = arith.mulf %82, %81 : vector<1x20x20xf32>
    %84 = arith.addf %78, %83 : vector<1x20x20xf32>
    %c14 = arith.constant 14 : index
    %85 = memref.load %arg1[%c14] : memref<100xf32, #tpu.memory_space<smem>>
    %c0_56 = arith.constant 0 : index
    %c2_57 = arith.constant 2 : index
    %c0_58 = arith.constant 0 : index
    %c3_59 = arith.constant 3 : index
    %86 = vector.load %arg2[%c0_56, %c2_57, %c0_58, %c3_59] : memref<1x4x24x24xf32, #tpu.memory_space<vmem>>, vector<1x1x20x20xf32>
    %87 = vector.shape_cast %86 : vector<1x1x20x20xf32> to vector<1x20x20xf32>
    %88 = vector.broadcast %85 : f32 to vector<1x20x20xf32>
    %89 = arith.mulf %88, %87 : vector<1x20x20xf32>
    %90 = arith.addf %84, %89 : vector<1x20x20xf32>
    %c15 = arith.constant 15 : index
    %91 = memref.load %arg1[%c15] : memref<100xf32, #tpu.memory_space<smem>>
    %c0_60 = arith.constant 0 : index
    %c3_61 = arith.constant 3 : index
    %c0_62 = arith.constant 0 : index
    %c3_63 = arith.constant 3 : index
    %92 = vector.load %arg2[%c0_60, %c3_61, %c0_62, %c3_63] : memref<1x4x24x24xf32, #tpu.memory_space<vmem>>, vector<1x1x20x20xf32>
    %93 = vector.shape_cast %92 : vector<1x1x20x20xf32> to vector<1x20x20xf32>
    %94 = vector.broadcast %91 : f32 to vector<1x20x20xf32>
    %95 = arith.mulf %94, %93 : vector<1x20x20xf32>
    %96 = arith.addf %90, %95 : vector<1x20x20xf32>
    %c16 = arith.constant 16 : index
    %97 = memref.load %arg1[%c16] : memref<100xf32, #tpu.memory_space<smem>>
    %c0_64 = arith.constant 0 : index
    %c0_65 = arith.constant 0 : index
    %c0_66 = arith.constant 0 : index
    %c4_67 = arith.constant 4 : index
    %98 = vector.load %arg2[%c0_64, %c0_65, %c0_66, %c4_67] : memref<1x4x24x24xf32, #tpu.memory_space<vmem>>, vector<1x1x20x20xf32>
    %99 = vector.shape_cast %98 : vector<1x1x20x20xf32> to vector<1x20x20xf32>
    %100 = vector.broadcast %97 : f32 to vector<1x20x20xf32>
    %101 = arith.mulf %100, %99 : vector<1x20x20xf32>
    %102 = arith.addf %96, %101 : vector<1x20x20xf32>
    %c17 = arith.constant 17 : index
    %103 = memref.load %arg1[%c17] : memref<100xf32, #tpu.memory_space<smem>>
    %c0_68 = arith.constant 0 : index
    %c1_69 = arith.constant 1 : index
    %c0_70 = arith.constant 0 : index
    %c4_71 = arith.constant 4 : index
    %104 = vector.load %arg2[%c0_68, %c1_69, %c0_70, %c4_71] : memref<1x4x24x24xf32, #tpu.memory_space<vmem>>, vector<1x1x20x20xf32>
    %105 = vector.shape_cast %104 : vector<1x1x20x20xf32> to vector<1x20x20xf32>
    %106 = vector.broadcast %103 : f32 to vector<1x20x20xf32>
    %107 = arith.mulf %106, %105 : vector<1x20x20xf32>
    %108 = arith.addf %102, %107 : vector<1x20x20xf32>
    %c18 = arith.constant 18 : index
    %109 = memref.load %arg1[%c18] : memref<100xf32, #tpu.memory_space<smem>>
    %c0_72 = arith.constant 0 : index
    %c2_73 = arith.constant 2 : index
    %c0_74 = arith.constant 0 : index
    %c4_75 = arith.constant 4 : index
    %110 = vector.load %arg2[%c0_72, %c2_73, %c0_74, %c4_75] : memref<1x4x24x24xf32, #tpu.memory_space<vmem>>, vector<1x1x20x20xf32>
    %111 = vector.shape_cast %110 : vector<1x1x20x20xf32> to vector<1x20x20xf32>
    %112 = vector.broadcast %109 : f32 to vector<1x20x20xf32>
    %113 = arith.mulf %112, %111 : vector<1x20x20xf32>
    %114 = arith.addf %108, %113 : vector<1x20x20xf32>
    %c19 = arith.constant 19 : index
    %115 = memref.load %arg1[%c19] : memref<100xf32, #tpu.memory_space<smem>>
    %c0_76 = arith.constant 0 : index
    %c3_77 = arith.constant 3 : index
    %c0_78 = arith.constant 0 : index
    %c4_79 = arith.constant 4 : index
    %116 = vector.load %arg2[%c0_76, %c3_77, %c0_78, %c4_79] : memref<1x4x24x24xf32, #tpu.memory_space<vmem>>, vector<1x1x20x20xf32>
    %117 = vector.shape_cast %116 : vector<1x1x20x20xf32> to vector<1x20x20xf32>
    %118 = vector.broadcast %115 : f32 to vector<1x20x20xf32>
    %119 = arith.mulf %118, %117 : vector<1x20x20xf32>
    %120 = arith.addf %114, %119 : vector<1x20x20xf32>
    %c20 = arith.constant 20 : index
    %121 = memref.load %arg1[%c20] : memref<100xf32, #tpu.memory_space<smem>>
    %c0_80 = arith.constant 0 : index
    %c0_81 = arith.constant 0 : index
    %c1_82 = arith.constant 1 : index
    %c0_83 = arith.constant 0 : index
    %122 = vector.load %arg2[%c0_80, %c0_81, %c1_82, %c0_83] : memref<1x4x24x24xf32, #tpu.memory_space<vmem>>, vector<1x1x20x20xf32>
    %123 = vector.shape_cast %122 : vector<1x1x20x20xf32> to vector<1x20x20xf32>
    %124 = vector.broadcast %121 : f32 to vector<1x20x20xf32>
    %125 = arith.mulf %124, %123 : vector<1x20x20xf32>
    %126 = arith.addf %120, %125 : vector<1x20x20xf32>
    %c21 = arith.constant 21 : index
    %127 = memref.load %arg1[%c21] : memref<100xf32, #tpu.memory_space<smem>>
    %c0_84 = arith.constant 0 : index
    %c1_85 = arith.constant 1 : index
    %c1_86 = arith.constant 1 : index
    %c0_87 = arith.constant 0 : index
    %128 = vector.load %arg2[%c0_84, %c1_85, %c1_86, %c0_87] : memref<1x4x24x24xf32, #tpu.memory_space<vmem>>, vector<1x1x20x20xf32>
    %129 = vector.shape_cast %128 : vector<1x1x20x20xf32> to vector<1x20x20xf32>
    %130 = vector.broadcast %127 : f32 to vector<1x20x20xf32>
    %131 = arith.mulf %130, %129 : vector<1x20x20xf32>
    %132 = arith.addf %126, %131 : vector<1x20x20xf32>
    %c22 = arith.constant 22 : index
    %133 = memref.load %arg1[%c22] : memref<100xf32, #tpu.memory_space<smem>>
    %c0_88 = arith.constant 0 : index
    %c2_89 = arith.constant 2 : index
    %c1_90 = arith.constant 1 : index
    %c0_91 = arith.constant 0 : index
    %134 = vector.load %arg2[%c0_88, %c2_89, %c1_90, %c0_91] : memref<1x4x24x24xf32, #tpu.memory_space<vmem>>, vector<1x1x20x20xf32>
    %135 = vector.shape_cast %134 : vector<1x1x20x20xf32> to vector<1x20x20xf32>
    %136 = vector.broadcast %133 : f32 to vector<1x20x20xf32>
    %137 = arith.mulf %136, %135 : vector<1x20x20xf32>
    %138 = arith.addf %132, %137 : vector<1x20x20xf32>
    %c23 = arith.constant 23 : index
    %139 = memref.load %arg1[%c23] : memref<100xf32, #tpu.memory_space<smem>>
    %c0_92 = arith.constant 0 : index
    %c3_93 = arith.constant 3 : index
    %c1_94 = arith.constant 1 : index
    %c0_95 = arith.constant 0 : index
    %140 = vector.load %arg2[%c0_92, %c3_93, %c1_94, %c0_95] : memref<1x4x24x24xf32, #tpu.memory_space<vmem>>, vector<1x1x20x20xf32>
    %141 = vector.shape_cast %140 : vector<1x1x20x20xf32> to vector<1x20x20xf32>
    %142 = vector.broadcast %139 : f32 to vector<1x20x20xf32>
    %143 = arith.mulf %142, %141 : vector<1x20x20xf32>
    %144 = arith.addf %138, %143 : vector<1x20x20xf32>
    %c24 = arith.constant 24 : index
    %145 = memref.load %arg1[%c24] : memref<100xf32, #tpu.memory_space<smem>>
    %c0_96 = arith.constant 0 : index
    %c0_97 = arith.constant 0 : index
    %c1_98 = arith.constant 1 : index
    %c1_99 = arith.constant 1 : index
    %146 = vector.load %arg2[%c0_96, %c0_97, %c1_98, %c1_99] : memref<1x4x24x24xf32, #tpu.memory_space<vmem>>, vector<1x1x20x20xf32>
    %147 = vector.shape_cast %146 : vector<1x1x20x20xf32> to vector<1x20x20xf32>
    %148 = vector.broadcast %145 : f32 to vector<1x20x20xf32>
    %149 = arith.mulf %148, %147 : vector<1x20x20xf32>
    %150 = arith.addf %144, %149 : vector<1x20x20xf32>
    %c25 = arith.constant 25 : index
    %151 = memref.load %arg1[%c25] : memref<100xf32, #tpu.memory_space<smem>>
    %c0_100 = arith.constant 0 : index
    %c1_101 = arith.constant 1 : index
    %c1_102 = arith.constant 1 : index
    %c1_103 = arith.constant 1 : index
    %152 = vector.load %arg2[%c0_100, %c1_101, %c1_102, %c1_103] : memref<1x4x24x24xf32, #tpu.memory_space<vmem>>, vector<1x1x20x20xf32>
    %153 = vector.shape_cast %152 : vector<1x1x20x20xf32> to vector<1x20x20xf32>
    %154 = vector.broadcast %151 : f32 to vector<1x20x20xf32>
    %155 = arith.mulf %154, %153 : vector<1x20x20xf32>
    %156 = arith.addf %150, %155 : vector<1x20x20xf32>
    %c26 = arith.constant 26 : index
    %157 = memref.load %arg1[%c26] : memref<100xf32, #tpu.memory_space<smem>>
    %c0_104 = arith.constant 0 : index
    %c2_105 = arith.constant 2 : index
    %c1_106 = arith.constant 1 : index
    %c1_107 = arith.constant 1 : index
    %158 = vector.load %arg2[%c0_104, %c2_105, %c1_106, %c1_107] : memref<1x4x24x24xf32, #tpu.memory_space<vmem>>, vector<1x1x20x20xf32>
    %159 = vector.shape_cast %158 : vector<1x1x20x20xf32> to vector<1x20x20xf32>
    %160 = vector.broadcast %157 : f32 to vector<1x20x20xf32>
    %161 = arith.mulf %160, %159 : vector<1x20x20xf32>
    %162 = arith.addf %156, %161 : vector<1x20x20xf32>
    %c27 = arith.constant 27 : index
    %163 = memref.load %arg1[%c27] : memref<100xf32, #tpu.memory_space<smem>>
    %c0_108 = arith.constant 0 : index
    %c3_109 = arith.constant 3 : index
    %c1_110 = arith.constant 1 : index
    %c1_111 = arith.constant 1 : index
    %164 = vector.load %arg2[%c0_108, %c3_109, %c1_110, %c1_111] : memref<1x4x24x24xf32, #tpu.memory_space<vmem>>, vector<1x1x20x20xf32>
    %165 = vector.shape_cast %164 : vector<1x1x20x20xf32> to vector<1x20x20xf32>
    %166 = vector.broadcast %163 : f32 to vector<1x20x20xf32>
    %167 = arith.mulf %166, %165 : vector<1x20x20xf32>
    %168 = arith.addf %162, %167 : vector<1x20x20xf32>
    %c28 = arith.constant 28 : index
    %169 = memref.load %arg1[%c28] : memref<100xf32, #tpu.memory_space<smem>>
    %c0_112 = arith.constant 0 : index
    %c0_113 = arith.constant 0 : index
    %c1_114 = arith.constant 1 : index
    %c2_115 = arith.constant 2 : index
    %170 = vector.load %arg2[%c0_112, %c0_113, %c1_114, %c2_115] : memref<1x4x24x24xf32, #tpu.memory_space<vmem>>, vector<1x1x20x20xf32>
    %171 = vector.shape_cast %170 : vector<1x1x20x20xf32> to vector<1x20x20xf32>
    %172 = vector.broadcast %169 : f32 to vector<1x20x20xf32>
    %173 = arith.mulf %172, %171 : vector<1x20x20xf32>
    %174 = arith.addf %168, %173 : vector<1x20x20xf32>
    %c29 = arith.constant 29 : index
    %175 = memref.load %arg1[%c29] : memref<100xf32, #tpu.memory_space<smem>>
    %c0_116 = arith.constant 0 : index
    %c1_117 = arith.constant 1 : index
    %c1_118 = arith.constant 1 : index
    %c2_119 = arith.constant 2 : index
    %176 = vector.load %arg2[%c0_116, %c1_117, %c1_118, %c2_119] : memref<1x4x24x24xf32, #tpu.memory_space<vmem>>, vector<1x1x20x20xf32>
    %177 = vector.shape_cast %176 : vector<1x1x20x20xf32> to vector<1x20x20xf32>
    %178 = vector.broadcast %175 : f32 to vector<1x20x20xf32>
    %179 = arith.mulf %178, %177 : vector<1x20x20xf32>
    %180 = arith.addf %174, %179 : vector<1x20x20xf32>
    %c30 = arith.constant 30 : index
    %181 = memref.load %arg1[%c30] : memref<100xf32, #tpu.memory_space<smem>>
    %c0_120 = arith.constant 0 : index
    %c2_121 = arith.constant 2 : index
    %c1_122 = arith.constant 1 : index
    %c2_123 = arith.constant 2 : index
    %182 = vector.load %arg2[%c0_120, %c2_121, %c1_122, %c2_123] : memref<1x4x24x24xf32, #tpu.memory_space<vmem>>, vector<1x1x20x20xf32>
    %183 = vector.shape_cast %182 : vector<1x1x20x20xf32> to vector<1x20x20xf32>
    %184 = vector.broadcast %181 : f32 to vector<1x20x20xf32>
    %185 = arith.mulf %184, %183 : vector<1x20x20xf32>
    %186 = arith.addf %180, %185 : vector<1x20x20xf32>
    %c31 = arith.constant 31 : index
    %187 = memref.load %arg1[%c31] : memref<100xf32, #tpu.memory_space<smem>>
    %c0_124 = arith.constant 0 : index
    %c3_125 = arith.constant 3 : index
    %c1_126 = arith.constant 1 : index
    %c2_127 = arith.constant 2 : index
    %188 = vector.load %arg2[%c0_124, %c3_125, %c1_126, %c2_127] : memref<1x4x24x24xf32, #tpu.memory_space<vmem>>, vector<1x1x20x20xf32>
    %189 = vector.shape_cast %188 : vector<1x1x20x20xf32> to vector<1x20x20xf32>
    %190 = vector.broadcast %187 : f32 to vector<1x20x20xf32>
    %191 = arith.mulf %190, %189 : vector<1x20x20xf32>
    %192 = arith.addf %186, %191 : vector<1x20x20xf32>
    %c32 = arith.constant 32 : index
    %193 = memref.load %arg1[%c32] : memref<100xf32, #tpu.memory_space<smem>>
    %c0_128 = arith.constant 0 : index
    %c0_129 = arith.constant 0 : index
    %c1_130 = arith.constant 1 : index
    %c3_131 = arith.constant 3 : index
    %194 = vector.load %arg2[%c0_128, %c0_129, %c1_130, %c3_131] : memref<1x4x24x24xf32, #tpu.memory_space<vmem>>, vector<1x1x20x20xf32>
    %195 = vector.shape_cast %194 : vector<1x1x20x20xf32> to vector<1x20x20xf32>
    %196 = vector.broadcast %193 : f32 to vector<1x20x20xf32>
    %197 = arith.mulf %196, %195 : vector<1x20x20xf32>
    %198 = arith.addf %192, %197 : vector<1x20x20xf32>
    %c33 = arith.constant 33 : index
    %199 = memref.load %arg1[%c33] : memref<100xf32, #tpu.memory_space<smem>>
    %c0_132 = arith.constant 0 : index
    %c1_133 = arith.constant 1 : index
    %c1_134 = arith.constant 1 : index
    %c3_135 = arith.constant 3 : index
    %200 = vector.load %arg2[%c0_132, %c1_133, %c1_134, %c3_135] : memref<1x4x24x24xf32, #tpu.memory_space<vmem>>, vector<1x1x20x20xf32>
    %201 = vector.shape_cast %200 : vector<1x1x20x20xf32> to vector<1x20x20xf32>
    %202 = vector.broadcast %199 : f32 to vector<1x20x20xf32>
    %203 = arith.mulf %202, %201 : vector<1x20x20xf32>
    %204 = arith.addf %198, %203 : vector<1x20x20xf32>
    %c34 = arith.constant 34 : index
    %205 = memref.load %arg1[%c34] : memref<100xf32, #tpu.memory_space<smem>>
    %c0_136 = arith.constant 0 : index
    %c2_137 = arith.constant 2 : index
    %c1_138 = arith.constant 1 : index
    %c3_139 = arith.constant 3 : index
    %206 = vector.load %arg2[%c0_136, %c2_137, %c1_138, %c3_139] : memref<1x4x24x24xf32, #tpu.memory_space<vmem>>, vector<1x1x20x20xf32>
    %207 = vector.shape_cast %206 : vector<1x1x20x20xf32> to vector<1x20x20xf32>
    %208 = vector.broadcast %205 : f32 to vector<1x20x20xf32>
    %209 = arith.mulf %208, %207 : vector<1x20x20xf32>
    %210 = arith.addf %204, %209 : vector<1x20x20xf32>
    %c35 = arith.constant 35 : index
    %211 = memref.load %arg1[%c35] : memref<100xf32, #tpu.memory_space<smem>>
    %c0_140 = arith.constant 0 : index
    %c3_141 = arith.constant 3 : index
    %c1_142 = arith.constant 1 : index
    %c3_143 = arith.constant 3 : index
    %212 = vector.load %arg2[%c0_140, %c3_141, %c1_142, %c3_143] : memref<1x4x24x24xf32, #tpu.memory_space<vmem>>, vector<1x1x20x20xf32>
    %213 = vector.shape_cast %212 : vector<1x1x20x20xf32> to vector<1x20x20xf32>
    %214 = vector.broadcast %211 : f32 to vector<1x20x20xf32>
    %215 = arith.mulf %214, %213 : vector<1x20x20xf32>
    %216 = arith.addf %210, %215 : vector<1x20x20xf32>
    %c36 = arith.constant 36 : index
    %217 = memref.load %arg1[%c36] : memref<100xf32, #tpu.memory_space<smem>>
    %c0_144 = arith.constant 0 : index
    %c0_145 = arith.constant 0 : index
    %c1_146 = arith.constant 1 : index
    %c4_147 = arith.constant 4 : index
    %218 = vector.load %arg2[%c0_144, %c0_145, %c1_146, %c4_147] : memref<1x4x24x24xf32, #tpu.memory_space<vmem>>, vector<1x1x20x20xf32>
    %219 = vector.shape_cast %218 : vector<1x1x20x20xf32> to vector<1x20x20xf32>
    %220 = vector.broadcast %217 : f32 to vector<1x20x20xf32>
    %221 = arith.mulf %220, %219 : vector<1x20x20xf32>
    %222 = arith.addf %216, %221 : vector<1x20x20xf32>
    %c37 = arith.constant 37 : index
    %223 = memref.load %arg1[%c37] : memref<100xf32, #tpu.memory_space<smem>>
    %c0_148 = arith.constant 0 : index
    %c1_149 = arith.constant 1 : index
    %c1_150 = arith.constant 1 : index
    %c4_151 = arith.constant 4 : index
    %224 = vector.load %arg2[%c0_148, %c1_149, %c1_150, %c4_151] : memref<1x4x24x24xf32, #tpu.memory_space<vmem>>, vector<1x1x20x20xf32>
    %225 = vector.shape_cast %224 : vector<1x1x20x20xf32> to vector<1x20x20xf32>
    %226 = vector.broadcast %223 : f32 to vector<1x20x20xf32>
    %227 = arith.mulf %226, %225 : vector<1x20x20xf32>
    %228 = arith.addf %222, %227 : vector<1x20x20xf32>
    %c38 = arith.constant 38 : index
    %229 = memref.load %arg1[%c38] : memref<100xf32, #tpu.memory_space<smem>>
    %c0_152 = arith.constant 0 : index
    %c2_153 = arith.constant 2 : index
    %c1_154 = arith.constant 1 : index
    %c4_155 = arith.constant 4 : index
    %230 = vector.load %arg2[%c0_152, %c2_153, %c1_154, %c4_155] : memref<1x4x24x24xf32, #tpu.memory_space<vmem>>, vector<1x1x20x20xf32>
    %231 = vector.shape_cast %230 : vector<1x1x20x20xf32> to vector<1x20x20xf32>
    %232 = vector.broadcast %229 : f32 to vector<1x20x20xf32>
    %233 = arith.mulf %232, %231 : vector<1x20x20xf32>
    %234 = arith.addf %228, %233 : vector<1x20x20xf32>
    %c39 = arith.constant 39 : index
    %235 = memref.load %arg1[%c39] : memref<100xf32, #tpu.memory_space<smem>>
    %c0_156 = arith.constant 0 : index
    %c3_157 = arith.constant 3 : index
    %c1_158 = arith.constant 1 : index
    %c4_159 = arith.constant 4 : index
    %236 = vector.load %arg2[%c0_156, %c3_157, %c1_158, %c4_159] : memref<1x4x24x24xf32, #tpu.memory_space<vmem>>, vector<1x1x20x20xf32>
    %237 = vector.shape_cast %236 : vector<1x1x20x20xf32> to vector<1x20x20xf32>
    %238 = vector.broadcast %235 : f32 to vector<1x20x20xf32>
    %239 = arith.mulf %238, %237 : vector<1x20x20xf32>
    %240 = arith.addf %234, %239 : vector<1x20x20xf32>
    %c40 = arith.constant 40 : index
    %241 = memref.load %arg1[%c40] : memref<100xf32, #tpu.memory_space<smem>>
    %c0_160 = arith.constant 0 : index
    %c0_161 = arith.constant 0 : index
    %c2_162 = arith.constant 2 : index
    %c0_163 = arith.constant 0 : index
    %242 = vector.load %arg2[%c0_160, %c0_161, %c2_162, %c0_163] : memref<1x4x24x24xf32, #tpu.memory_space<vmem>>, vector<1x1x20x20xf32>
    %243 = vector.shape_cast %242 : vector<1x1x20x20xf32> to vector<1x20x20xf32>
    %244 = vector.broadcast %241 : f32 to vector<1x20x20xf32>
    %245 = arith.mulf %244, %243 : vector<1x20x20xf32>
    %246 = arith.addf %240, %245 : vector<1x20x20xf32>
    %c41 = arith.constant 41 : index
    %247 = memref.load %arg1[%c41] : memref<100xf32, #tpu.memory_space<smem>>
    %c0_164 = arith.constant 0 : index
    %c1_165 = arith.constant 1 : index
    %c2_166 = arith.constant 2 : index
    %c0_167 = arith.constant 0 : index
    %248 = vector.load %arg2[%c0_164, %c1_165, %c2_166, %c0_167] : memref<1x4x24x24xf32, #tpu.memory_space<vmem>>, vector<1x1x20x20xf32>
    %249 = vector.shape_cast %248 : vector<1x1x20x20xf32> to vector<1x20x20xf32>
    %250 = vector.broadcast %247 : f32 to vector<1x20x20xf32>
    %251 = arith.mulf %250, %249 : vector<1x20x20xf32>
    %252 = arith.addf %246, %251 : vector<1x20x20xf32>
    %c42 = arith.constant 42 : index
    %253 = memref.load %arg1[%c42] : memref<100xf32, #tpu.memory_space<smem>>
    %c0_168 = arith.constant 0 : index
    %c2_169 = arith.constant 2 : index
    %c2_170 = arith.constant 2 : index
    %c0_171 = arith.constant 0 : index
    %254 = vector.load %arg2[%c0_168, %c2_169, %c2_170, %c0_171] : memref<1x4x24x24xf32, #tpu.memory_space<vmem>>, vector<1x1x20x20xf32>
    %255 = vector.shape_cast %254 : vector<1x1x20x20xf32> to vector<1x20x20xf32>
    %256 = vector.broadcast %253 : f32 to vector<1x20x20xf32>
    %257 = arith.mulf %256, %255 : vector<1x20x20xf32>
    %258 = arith.addf %252, %257 : vector<1x20x20xf32>
    %c43 = arith.constant 43 : index
    %259 = memref.load %arg1[%c43] : memref<100xf32, #tpu.memory_space<smem>>
    %c0_172 = arith.constant 0 : index
    %c3_173 = arith.constant 3 : index
    %c2_174 = arith.constant 2 : index
    %c0_175 = arith.constant 0 : index
    %260 = vector.load %arg2[%c0_172, %c3_173, %c2_174, %c0_175] : memref<1x4x24x24xf32, #tpu.memory_space<vmem>>, vector<1x1x20x20xf32>
    %261 = vector.shape_cast %260 : vector<1x1x20x20xf32> to vector<1x20x20xf32>
    %262 = vector.broadcast %259 : f32 to vector<1x20x20xf32>
    %263 = arith.mulf %262, %261 : vector<1x20x20xf32>
    %264 = arith.addf %258, %263 : vector<1x20x20xf32>
    %c44 = arith.constant 44 : index
    %265 = memref.load %arg1[%c44] : memref<100xf32, #tpu.memory_space<smem>>
    %c0_176 = arith.constant 0 : index
    %c0_177 = arith.constant 0 : index
    %c2_178 = arith.constant 2 : index
    %c1_179 = arith.constant 1 : index
    %266 = vector.load %arg2[%c0_176, %c0_177, %c2_178, %c1_179] : memref<1x4x24x24xf32, #tpu.memory_space<vmem>>, vector<1x1x20x20xf32>
    %267 = vector.shape_cast %266 : vector<1x1x20x20xf32> to vector<1x20x20xf32>
    %268 = vector.broadcast %265 : f32 to vector<1x20x20xf32>
    %269 = arith.mulf %268, %267 : vector<1x20x20xf32>
    %270 = arith.addf %264, %269 : vector<1x20x20xf32>
    %c45 = arith.constant 45 : index
    %271 = memref.load %arg1[%c45] : memref<100xf32, #tpu.memory_space<smem>>
    %c0_180 = arith.constant 0 : index
    %c1_181 = arith.constant 1 : index
    %c2_182 = arith.constant 2 : index
    %c1_183 = arith.constant 1 : index
    %272 = vector.load %arg2[%c0_180, %c1_181, %c2_182, %c1_183] : memref<1x4x24x24xf32, #tpu.memory_space<vmem>>, vector<1x1x20x20xf32>
    %273 = vector.shape_cast %272 : vector<1x1x20x20xf32> to vector<1x20x20xf32>
    %274 = vector.broadcast %271 : f32 to vector<1x20x20xf32>
    %275 = arith.mulf %274, %273 : vector<1x20x20xf32>
    %276 = arith.addf %270, %275 : vector<1x20x20xf32>
    %c46 = arith.constant 46 : index
    %277 = memref.load %arg1[%c46] : memref<100xf32, #tpu.memory_space<smem>>
    %c0_184 = arith.constant 0 : index
    %c2_185 = arith.constant 2 : index
    %c2_186 = arith.constant 2 : index
    %c1_187 = arith.constant 1 : index
    %278 = vector.load %arg2[%c0_184, %c2_185, %c2_186, %c1_187] : memref<1x4x24x24xf32, #tpu.memory_space<vmem>>, vector<1x1x20x20xf32>
    %279 = vector.shape_cast %278 : vector<1x1x20x20xf32> to vector<1x20x20xf32>
    %280 = vector.broadcast %277 : f32 to vector<1x20x20xf32>
    %281 = arith.mulf %280, %279 : vector<1x20x20xf32>
    %282 = arith.addf %276, %281 : vector<1x20x20xf32>
    %c47 = arith.constant 47 : index
    %283 = memref.load %arg1[%c47] : memref<100xf32, #tpu.memory_space<smem>>
    %c0_188 = arith.constant 0 : index
    %c3_189 = arith.constant 3 : index
    %c2_190 = arith.constant 2 : index
    %c1_191 = arith.constant 1 : index
    %284 = vector.load %arg2[%c0_188, %c3_189, %c2_190, %c1_191] : memref<1x4x24x24xf32, #tpu.memory_space<vmem>>, vector<1x1x20x20xf32>
    %285 = vector.shape_cast %284 : vector<1x1x20x20xf32> to vector<1x20x20xf32>
    %286 = vector.broadcast %283 : f32 to vector<1x20x20xf32>
    %287 = arith.mulf %286, %285 : vector<1x20x20xf32>
    %288 = arith.addf %282, %287 : vector<1x20x20xf32>
    %c48 = arith.constant 48 : index
    %289 = memref.load %arg1[%c48] : memref<100xf32, #tpu.memory_space<smem>>
    %c0_192 = arith.constant 0 : index
    %c0_193 = arith.constant 0 : index
    %c2_194 = arith.constant 2 : index
    %c2_195 = arith.constant 2 : index
    %290 = vector.load %arg2[%c0_192, %c0_193, %c2_194, %c2_195] : memref<1x4x24x24xf32, #tpu.memory_space<vmem>>, vector<1x1x20x20xf32>
    %291 = vector.shape_cast %290 : vector<1x1x20x20xf32> to vector<1x20x20xf32>
    %292 = vector.broadcast %289 : f32 to vector<1x20x20xf32>
    %293 = arith.mulf %292, %291 : vector<1x20x20xf32>
    %294 = arith.addf %288, %293 : vector<1x20x20xf32>
    %c49 = arith.constant 49 : index
    %295 = memref.load %arg1[%c49] : memref<100xf32, #tpu.memory_space<smem>>
    %c0_196 = arith.constant 0 : index
    %c1_197 = arith.constant 1 : index
    %c2_198 = arith.constant 2 : index
    %c2_199 = arith.constant 2 : index
    %296 = vector.load %arg2[%c0_196, %c1_197, %c2_198, %c2_199] : memref<1x4x24x24xf32, #tpu.memory_space<vmem>>, vector<1x1x20x20xf32>
    %297 = vector.shape_cast %296 : vector<1x1x20x20xf32> to vector<1x20x20xf32>
    %298 = vector.broadcast %295 : f32 to vector<1x20x20xf32>
    %299 = arith.mulf %298, %297 : vector<1x20x20xf32>
    %300 = arith.addf %294, %299 : vector<1x20x20xf32>
    %c50 = arith.constant 50 : index
    %301 = memref.load %arg1[%c50] : memref<100xf32, #tpu.memory_space<smem>>
    %c0_200 = arith.constant 0 : index
    %c2_201 = arith.constant 2 : index
    %c2_202 = arith.constant 2 : index
    %c2_203 = arith.constant 2 : index
    %302 = vector.load %arg2[%c0_200, %c2_201, %c2_202, %c2_203] : memref<1x4x24x24xf32, #tpu.memory_space<vmem>>, vector<1x1x20x20xf32>
    %303 = vector.shape_cast %302 : vector<1x1x20x20xf32> to vector<1x20x20xf32>
    %304 = vector.broadcast %301 : f32 to vector<1x20x20xf32>
    %305 = arith.mulf %304, %303 : vector<1x20x20xf32>
    %306 = arith.addf %300, %305 : vector<1x20x20xf32>
    %c51 = arith.constant 51 : index
    %307 = memref.load %arg1[%c51] : memref<100xf32, #tpu.memory_space<smem>>
    %c0_204 = arith.constant 0 : index
    %c3_205 = arith.constant 3 : index
    %c2_206 = arith.constant 2 : index
    %c2_207 = arith.constant 2 : index
    %308 = vector.load %arg2[%c0_204, %c3_205, %c2_206, %c2_207] : memref<1x4x24x24xf32, #tpu.memory_space<vmem>>, vector<1x1x20x20xf32>
    %309 = vector.shape_cast %308 : vector<1x1x20x20xf32> to vector<1x20x20xf32>
    %310 = vector.broadcast %307 : f32 to vector<1x20x20xf32>
    %311 = arith.mulf %310, %309 : vector<1x20x20xf32>
    %312 = arith.addf %306, %311 : vector<1x20x20xf32>
    %c52 = arith.constant 52 : index
    %313 = memref.load %arg1[%c52] : memref<100xf32, #tpu.memory_space<smem>>
    %c0_208 = arith.constant 0 : index
    %c0_209 = arith.constant 0 : index
    %c2_210 = arith.constant 2 : index
    %c3_211 = arith.constant 3 : index
    %314 = vector.load %arg2[%c0_208, %c0_209, %c2_210, %c3_211] : memref<1x4x24x24xf32, #tpu.memory_space<vmem>>, vector<1x1x20x20xf32>
    %315 = vector.shape_cast %314 : vector<1x1x20x20xf32> to vector<1x20x20xf32>
    %316 = vector.broadcast %313 : f32 to vector<1x20x20xf32>
    %317 = arith.mulf %316, %315 : vector<1x20x20xf32>
    %318 = arith.addf %312, %317 : vector<1x20x20xf32>
    %c53 = arith.constant 53 : index
    %319 = memref.load %arg1[%c53] : memref<100xf32, #tpu.memory_space<smem>>
    %c0_212 = arith.constant 0 : index
    %c1_213 = arith.constant 1 : index
    %c2_214 = arith.constant 2 : index
    %c3_215 = arith.constant 3 : index
    %320 = vector.load %arg2[%c0_212, %c1_213, %c2_214, %c3_215] : memref<1x4x24x24xf32, #tpu.memory_space<vmem>>, vector<1x1x20x20xf32>
    %321 = vector.shape_cast %320 : vector<1x1x20x20xf32> to vector<1x20x20xf32>
    %322 = vector.broadcast %319 : f32 to vector<1x20x20xf32>
    %323 = arith.mulf %322, %321 : vector<1x20x20xf32>
    %324 = arith.addf %318, %323 : vector<1x20x20xf32>
    %c54 = arith.constant 54 : index
    %325 = memref.load %arg1[%c54] : memref<100xf32, #tpu.memory_space<smem>>
    %c0_216 = arith.constant 0 : index
    %c2_217 = arith.constant 2 : index
    %c2_218 = arith.constant 2 : index
    %c3_219 = arith.constant 3 : index
    %326 = vector.load %arg2[%c0_216, %c2_217, %c2_218, %c3_219] : memref<1x4x24x24xf32, #tpu.memory_space<vmem>>, vector<1x1x20x20xf32>
    %327 = vector.shape_cast %326 : vector<1x1x20x20xf32> to vector<1x20x20xf32>
    %328 = vector.broadcast %325 : f32 to vector<1x20x20xf32>
    %329 = arith.mulf %328, %327 : vector<1x20x20xf32>
    %330 = arith.addf %324, %329 : vector<1x20x20xf32>
    %c55 = arith.constant 55 : index
    %331 = memref.load %arg1[%c55] : memref<100xf32, #tpu.memory_space<smem>>
    %c0_220 = arith.constant 0 : index
    %c3_221 = arith.constant 3 : index
    %c2_222 = arith.constant 2 : index
    %c3_223 = arith.constant 3 : index
    %332 = vector.load %arg2[%c0_220, %c3_221, %c2_222, %c3_223] : memref<1x4x24x24xf32, #tpu.memory_space<vmem>>, vector<1x1x20x20xf32>
    %333 = vector.shape_cast %332 : vector<1x1x20x20xf32> to vector<1x20x20xf32>
    %334 = vector.broadcast %331 : f32 to vector<1x20x20xf32>
    %335 = arith.mulf %334, %333 : vector<1x20x20xf32>
    %336 = arith.addf %330, %335 : vector<1x20x20xf32>
    %c56 = arith.constant 56 : index
    %337 = memref.load %arg1[%c56] : memref<100xf32, #tpu.memory_space<smem>>
    %c0_224 = arith.constant 0 : index
    %c0_225 = arith.constant 0 : index
    %c2_226 = arith.constant 2 : index
    %c4_227 = arith.constant 4 : index
    %338 = vector.load %arg2[%c0_224, %c0_225, %c2_226, %c4_227] : memref<1x4x24x24xf32, #tpu.memory_space<vmem>>, vector<1x1x20x20xf32>
    %339 = vector.shape_cast %338 : vector<1x1x20x20xf32> to vector<1x20x20xf32>
    %340 = vector.broadcast %337 : f32 to vector<1x20x20xf32>
    %341 = arith.mulf %340, %339 : vector<1x20x20xf32>
    %342 = arith.addf %336, %341 : vector<1x20x20xf32>
    %c57 = arith.constant 57 : index
    %343 = memref.load %arg1[%c57] : memref<100xf32, #tpu.memory_space<smem>>
    %c0_228 = arith.constant 0 : index
    %c1_229 = arith.constant 1 : index
    %c2_230 = arith.constant 2 : index
    %c4_231 = arith.constant 4 : index
    %344 = vector.load %arg2[%c0_228, %c1_229, %c2_230, %c4_231] : memref<1x4x24x24xf32, #tpu.memory_space<vmem>>, vector<1x1x20x20xf32>
    %345 = vector.shape_cast %344 : vector<1x1x20x20xf32> to vector<1x20x20xf32>
    %346 = vector.broadcast %343 : f32 to vector<1x20x20xf32>
    %347 = arith.mulf %346, %345 : vector<1x20x20xf32>
    %348 = arith.addf %342, %347 : vector<1x20x20xf32>
    %c58 = arith.constant 58 : index
    %349 = memref.load %arg1[%c58] : memref<100xf32, #tpu.memory_space<smem>>
    %c0_232 = arith.constant 0 : index
    %c2_233 = arith.constant 2 : index
    %c2_234 = arith.constant 2 : index
    %c4_235 = arith.constant 4 : index
    %350 = vector.load %arg2[%c0_232, %c2_233, %c2_234, %c4_235] : memref<1x4x24x24xf32, #tpu.memory_space<vmem>>, vector<1x1x20x20xf32>
    %351 = vector.shape_cast %350 : vector<1x1x20x20xf32> to vector<1x20x20xf32>
    %352 = vector.broadcast %349 : f32 to vector<1x20x20xf32>
    %353 = arith.mulf %352, %351 : vector<1x20x20xf32>
    %354 = arith.addf %348, %353 : vector<1x20x20xf32>
    %c59 = arith.constant 59 : index
    %355 = memref.load %arg1[%c59] : memref<100xf32, #tpu.memory_space<smem>>
    %c0_236 = arith.constant 0 : index
    %c3_237 = arith.constant 3 : index
    %c2_238 = arith.constant 2 : index
    %c4_239 = arith.constant 4 : index
    %356 = vector.load %arg2[%c0_236, %c3_237, %c2_238, %c4_239] : memref<1x4x24x24xf32, #tpu.memory_space<vmem>>, vector<1x1x20x20xf32>
    %357 = vector.shape_cast %356 : vector<1x1x20x20xf32> to vector<1x20x20xf32>
    %358 = vector.broadcast %355 : f32 to vector<1x20x20xf32>
    %359 = arith.mulf %358, %357 : vector<1x20x20xf32>
    %360 = arith.addf %354, %359 : vector<1x20x20xf32>
    %c60 = arith.constant 60 : index
    %361 = memref.load %arg1[%c60] : memref<100xf32, #tpu.memory_space<smem>>
    %c0_240 = arith.constant 0 : index
    %c0_241 = arith.constant 0 : index
    %c3_242 = arith.constant 3 : index
    %c0_243 = arith.constant 0 : index
    %362 = vector.load %arg2[%c0_240, %c0_241, %c3_242, %c0_243] : memref<1x4x24x24xf32, #tpu.memory_space<vmem>>, vector<1x1x20x20xf32>
    %363 = vector.shape_cast %362 : vector<1x1x20x20xf32> to vector<1x20x20xf32>
    %364 = vector.broadcast %361 : f32 to vector<1x20x20xf32>
    %365 = arith.mulf %364, %363 : vector<1x20x20xf32>
    %366 = arith.addf %360, %365 : vector<1x20x20xf32>
    %c61 = arith.constant 61 : index
    %367 = memref.load %arg1[%c61] : memref<100xf32, #tpu.memory_space<smem>>
    %c0_244 = arith.constant 0 : index
    %c1_245 = arith.constant 1 : index
    %c3_246 = arith.constant 3 : index
    %c0_247 = arith.constant 0 : index
    %368 = vector.load %arg2[%c0_244, %c1_245, %c3_246, %c0_247] : memref<1x4x24x24xf32, #tpu.memory_space<vmem>>, vector<1x1x20x20xf32>
    %369 = vector.shape_cast %368 : vector<1x1x20x20xf32> to vector<1x20x20xf32>
    %370 = vector.broadcast %367 : f32 to vector<1x20x20xf32>
    %371 = arith.mulf %370, %369 : vector<1x20x20xf32>
    %372 = arith.addf %366, %371 : vector<1x20x20xf32>
    %c62 = arith.constant 62 : index
    %373 = memref.load %arg1[%c62] : memref<100xf32, #tpu.memory_space<smem>>
    %c0_248 = arith.constant 0 : index
    %c2_249 = arith.constant 2 : index
    %c3_250 = arith.constant 3 : index
    %c0_251 = arith.constant 0 : index
    %374 = vector.load %arg2[%c0_248, %c2_249, %c3_250, %c0_251] : memref<1x4x24x24xf32, #tpu.memory_space<vmem>>, vector<1x1x20x20xf32>
    %375 = vector.shape_cast %374 : vector<1x1x20x20xf32> to vector<1x20x20xf32>
    %376 = vector.broadcast %373 : f32 to vector<1x20x20xf32>
    %377 = arith.mulf %376, %375 : vector<1x20x20xf32>
    %378 = arith.addf %372, %377 : vector<1x20x20xf32>
    %c63 = arith.constant 63 : index
    %379 = memref.load %arg1[%c63] : memref<100xf32, #tpu.memory_space<smem>>
    %c0_252 = arith.constant 0 : index
    %c3_253 = arith.constant 3 : index
    %c3_254 = arith.constant 3 : index
    %c0_255 = arith.constant 0 : index
    %380 = vector.load %arg2[%c0_252, %c3_253, %c3_254, %c0_255] : memref<1x4x24x24xf32, #tpu.memory_space<vmem>>, vector<1x1x20x20xf32>
    %381 = vector.shape_cast %380 : vector<1x1x20x20xf32> to vector<1x20x20xf32>
    %382 = vector.broadcast %379 : f32 to vector<1x20x20xf32>
    %383 = arith.mulf %382, %381 : vector<1x20x20xf32>
    %384 = arith.addf %378, %383 : vector<1x20x20xf32>
    %c64 = arith.constant 64 : index
    %385 = memref.load %arg1[%c64] : memref<100xf32, #tpu.memory_space<smem>>
    %c0_256 = arith.constant 0 : index
    %c0_257 = arith.constant 0 : index
    %c3_258 = arith.constant 3 : index
    %c1_259 = arith.constant 1 : index
    %386 = vector.load %arg2[%c0_256, %c0_257, %c3_258, %c1_259] : memref<1x4x24x24xf32, #tpu.memory_space<vmem>>, vector<1x1x20x20xf32>
    %387 = vector.shape_cast %386 : vector<1x1x20x20xf32> to vector<1x20x20xf32>
    %388 = vector.broadcast %385 : f32 to vector<1x20x20xf32>
    %389 = arith.mulf %388, %387 : vector<1x20x20xf32>
    %390 = arith.addf %384, %389 : vector<1x20x20xf32>
    %c65 = arith.constant 65 : index
    %391 = memref.load %arg1[%c65] : memref<100xf32, #tpu.memory_space<smem>>
    %c0_260 = arith.constant 0 : index
    %c1_261 = arith.constant 1 : index
    %c3_262 = arith.constant 3 : index
    %c1_263 = arith.constant 1 : index
    %392 = vector.load %arg2[%c0_260, %c1_261, %c3_262, %c1_263] : memref<1x4x24x24xf32, #tpu.memory_space<vmem>>, vector<1x1x20x20xf32>
    %393 = vector.shape_cast %392 : vector<1x1x20x20xf32> to vector<1x20x20xf32>
    %394 = vector.broadcast %391 : f32 to vector<1x20x20xf32>
    %395 = arith.mulf %394, %393 : vector<1x20x20xf32>
    %396 = arith.addf %390, %395 : vector<1x20x20xf32>
    %c66 = arith.constant 66 : index
    %397 = memref.load %arg1[%c66] : memref<100xf32, #tpu.memory_space<smem>>
    %c0_264 = arith.constant 0 : index
    %c2_265 = arith.constant 2 : index
    %c3_266 = arith.constant 3 : index
    %c1_267 = arith.constant 1 : index
    %398 = vector.load %arg2[%c0_264, %c2_265, %c3_266, %c1_267] : memref<1x4x24x24xf32, #tpu.memory_space<vmem>>, vector<1x1x20x20xf32>
    %399 = vector.shape_cast %398 : vector<1x1x20x20xf32> to vector<1x20x20xf32>
    %400 = vector.broadcast %397 : f32 to vector<1x20x20xf32>
    %401 = arith.mulf %400, %399 : vector<1x20x20xf32>
    %402 = arith.addf %396, %401 : vector<1x20x20xf32>
    %c67 = arith.constant 67 : index
    %403 = memref.load %arg1[%c67] : memref<100xf32, #tpu.memory_space<smem>>
    %c0_268 = arith.constant 0 : index
    %c3_269 = arith.constant 3 : index
    %c3_270 = arith.constant 3 : index
    %c1_271 = arith.constant 1 : index
    %404 = vector.load %arg2[%c0_268, %c3_269, %c3_270, %c1_271] : memref<1x4x24x24xf32, #tpu.memory_space<vmem>>, vector<1x1x20x20xf32>
    %405 = vector.shape_cast %404 : vector<1x1x20x20xf32> to vector<1x20x20xf32>
    %406 = vector.broadcast %403 : f32 to vector<1x20x20xf32>
    %407 = arith.mulf %406, %405 : vector<1x20x20xf32>
    %408 = arith.addf %402, %407 : vector<1x20x20xf32>
    %c68 = arith.constant 68 : index
    %409 = memref.load %arg1[%c68] : memref<100xf32, #tpu.memory_space<smem>>
    %c0_272 = arith.constant 0 : index
    %c0_273 = arith.constant 0 : index
    %c3_274 = arith.constant 3 : index
    %c2_275 = arith.constant 2 : index
    %410 = vector.load %arg2[%c0_272, %c0_273, %c3_274, %c2_275] : memref<1x4x24x24xf32, #tpu.memory_space<vmem>>, vector<1x1x20x20xf32>
    %411 = vector.shape_cast %410 : vector<1x1x20x20xf32> to vector<1x20x20xf32>
    %412 = vector.broadcast %409 : f32 to vector<1x20x20xf32>
    %413 = arith.mulf %412, %411 : vector<1x20x20xf32>
    %414 = arith.addf %408, %413 : vector<1x20x20xf32>
    %c69 = arith.constant 69 : index
    %415 = memref.load %arg1[%c69] : memref<100xf32, #tpu.memory_space<smem>>
    %c0_276 = arith.constant 0 : index
    %c1_277 = arith.constant 1 : index
    %c3_278 = arith.constant 3 : index
    %c2_279 = arith.constant 2 : index
    %416 = vector.load %arg2[%c0_276, %c1_277, %c3_278, %c2_279] : memref<1x4x24x24xf32, #tpu.memory_space<vmem>>, vector<1x1x20x20xf32>
    %417 = vector.shape_cast %416 : vector<1x1x20x20xf32> to vector<1x20x20xf32>
    %418 = vector.broadcast %415 : f32 to vector<1x20x20xf32>
    %419 = arith.mulf %418, %417 : vector<1x20x20xf32>
    %420 = arith.addf %414, %419 : vector<1x20x20xf32>
    %c70 = arith.constant 70 : index
    %421 = memref.load %arg1[%c70] : memref<100xf32, #tpu.memory_space<smem>>
    %c0_280 = arith.constant 0 : index
    %c2_281 = arith.constant 2 : index
    %c3_282 = arith.constant 3 : index
    %c2_283 = arith.constant 2 : index
    %422 = vector.load %arg2[%c0_280, %c2_281, %c3_282, %c2_283] : memref<1x4x24x24xf32, #tpu.memory_space<vmem>>, vector<1x1x20x20xf32>
    %423 = vector.shape_cast %422 : vector<1x1x20x20xf32> to vector<1x20x20xf32>
    %424 = vector.broadcast %421 : f32 to vector<1x20x20xf32>
    %425 = arith.mulf %424, %423 : vector<1x20x20xf32>
    %426 = arith.addf %420, %425 : vector<1x20x20xf32>
    %c71 = arith.constant 71 : index
    %427 = memref.load %arg1[%c71] : memref<100xf32, #tpu.memory_space<smem>>
    %c0_284 = arith.constant 0 : index
    %c3_285 = arith.constant 3 : index
    %c3_286 = arith.constant 3 : index
    %c2_287 = arith.constant 2 : index
    %428 = vector.load %arg2[%c0_284, %c3_285, %c3_286, %c2_287] : memref<1x4x24x24xf32, #tpu.memory_space<vmem>>, vector<1x1x20x20xf32>
    %429 = vector.shape_cast %428 : vector<1x1x20x20xf32> to vector<1x20x20xf32>
    %430 = vector.broadcast %427 : f32 to vector<1x20x20xf32>
    %431 = arith.mulf %430, %429 : vector<1x20x20xf32>
    %432 = arith.addf %426, %431 : vector<1x20x20xf32>
    %c72 = arith.constant 72 : index
    %433 = memref.load %arg1[%c72] : memref<100xf32, #tpu.memory_space<smem>>
    %c0_288 = arith.constant 0 : index
    %c0_289 = arith.constant 0 : index
    %c3_290 = arith.constant 3 : index
    %c3_291 = arith.constant 3 : index
    %434 = vector.load %arg2[%c0_288, %c0_289, %c3_290, %c3_291] : memref<1x4x24x24xf32, #tpu.memory_space<vmem>>, vector<1x1x20x20xf32>
    %435 = vector.shape_cast %434 : vector<1x1x20x20xf32> to vector<1x20x20xf32>
    %436 = vector.broadcast %433 : f32 to vector<1x20x20xf32>
    %437 = arith.mulf %436, %435 : vector<1x20x20xf32>
    %438 = arith.addf %432, %437 : vector<1x20x20xf32>
    %c73 = arith.constant 73 : index
    %439 = memref.load %arg1[%c73] : memref<100xf32, #tpu.memory_space<smem>>
    %c0_292 = arith.constant 0 : index
    %c1_293 = arith.constant 1 : index
    %c3_294 = arith.constant 3 : index
    %c3_295 = arith.constant 3 : index
    %440 = vector.load %arg2[%c0_292, %c1_293, %c3_294, %c3_295] : memref<1x4x24x24xf32, #tpu.memory_space<vmem>>, vector<1x1x20x20xf32>
    %441 = vector.shape_cast %440 : vector<1x1x20x20xf32> to vector<1x20x20xf32>
    %442 = vector.broadcast %439 : f32 to vector<1x20x20xf32>
    %443 = arith.mulf %442, %441 : vector<1x20x20xf32>
    %444 = arith.addf %438, %443 : vector<1x20x20xf32>
    %c74 = arith.constant 74 : index
    %445 = memref.load %arg1[%c74] : memref<100xf32, #tpu.memory_space<smem>>
    %c0_296 = arith.constant 0 : index
    %c2_297 = arith.constant 2 : index
    %c3_298 = arith.constant 3 : index
    %c3_299 = arith.constant 3 : index
    %446 = vector.load %arg2[%c0_296, %c2_297, %c3_298, %c3_299] : memref<1x4x24x24xf32, #tpu.memory_space<vmem>>, vector<1x1x20x20xf32>
    %447 = vector.shape_cast %446 : vector<1x1x20x20xf32> to vector<1x20x20xf32>
    %448 = vector.broadcast %445 : f32 to vector<1x20x20xf32>
    %449 = arith.mulf %448, %447 : vector<1x20x20xf32>
    %450 = arith.addf %444, %449 : vector<1x20x20xf32>
    %c75 = arith.constant 75 : index
    %451 = memref.load %arg1[%c75] : memref<100xf32, #tpu.memory_space<smem>>
    %c0_300 = arith.constant 0 : index
    %c3_301 = arith.constant 3 : index
    %c3_302 = arith.constant 3 : index
    %c3_303 = arith.constant 3 : index
    %452 = vector.load %arg2[%c0_300, %c3_301, %c3_302, %c3_303] : memref<1x4x24x24xf32, #tpu.memory_space<vmem>>, vector<1x1x20x20xf32>
    %453 = vector.shape_cast %452 : vector<1x1x20x20xf32> to vector<1x20x20xf32>
    %454 = vector.broadcast %451 : f32 to vector<1x20x20xf32>
    %455 = arith.mulf %454, %453 : vector<1x20x20xf32>
    %456 = arith.addf %450, %455 : vector<1x20x20xf32>
    %c76 = arith.constant 76 : index
    %457 = memref.load %arg1[%c76] : memref<100xf32, #tpu.memory_space<smem>>
    %c0_304 = arith.constant 0 : index
    %c0_305 = arith.constant 0 : index
    %c3_306 = arith.constant 3 : index
    %c4_307 = arith.constant 4 : index
    %458 = vector.load %arg2[%c0_304, %c0_305, %c3_306, %c4_307] : memref<1x4x24x24xf32, #tpu.memory_space<vmem>>, vector<1x1x20x20xf32>
    %459 = vector.shape_cast %458 : vector<1x1x20x20xf32> to vector<1x20x20xf32>
    %460 = vector.broadcast %457 : f32 to vector<1x20x20xf32>
    %461 = arith.mulf %460, %459 : vector<1x20x20xf32>
    %462 = arith.addf %456, %461 : vector<1x20x20xf32>
    %c77 = arith.constant 77 : index
    %463 = memref.load %arg1[%c77] : memref<100xf32, #tpu.memory_space<smem>>
    %c0_308 = arith.constant 0 : index
    %c1_309 = arith.constant 1 : index
    %c3_310 = arith.constant 3 : index
    %c4_311 = arith.constant 4 : index
    %464 = vector.load %arg2[%c0_308, %c1_309, %c3_310, %c4_311] : memref<1x4x24x24xf32, #tpu.memory_space<vmem>>, vector<1x1x20x20xf32>
    %465 = vector.shape_cast %464 : vector<1x1x20x20xf32> to vector<1x20x20xf32>
    %466 = vector.broadcast %463 : f32 to vector<1x20x20xf32>
    %467 = arith.mulf %466, %465 : vector<1x20x20xf32>
    %468 = arith.addf %462, %467 : vector<1x20x20xf32>
    %c78 = arith.constant 78 : index
    %469 = memref.load %arg1[%c78] : memref<100xf32, #tpu.memory_space<smem>>
    %c0_312 = arith.constant 0 : index
    %c2_313 = arith.constant 2 : index
    %c3_314 = arith.constant 3 : index
    %c4_315 = arith.constant 4 : index
    %470 = vector.load %arg2[%c0_312, %c2_313, %c3_314, %c4_315] : memref<1x4x24x24xf32, #tpu.memory_space<vmem>>, vector<1x1x20x20xf32>
    %471 = vector.shape_cast %470 : vector<1x1x20x20xf32> to vector<1x20x20xf32>
    %472 = vector.broadcast %469 : f32 to vector<1x20x20xf32>
    %473 = arith.mulf %472, %471 : vector<1x20x20xf32>
    %474 = arith.addf %468, %473 : vector<1x20x20xf32>
    %c79 = arith.constant 79 : index
    %475 = memref.load %arg1[%c79] : memref<100xf32, #tpu.memory_space<smem>>
    %c0_316 = arith.constant 0 : index
    %c3_317 = arith.constant 3 : index
    %c3_318 = arith.constant 3 : index
    %c4_319 = arith.constant 4 : index
    %476 = vector.load %arg2[%c0_316, %c3_317, %c3_318, %c4_319] : memref<1x4x24x24xf32, #tpu.memory_space<vmem>>, vector<1x1x20x20xf32>
    %477 = vector.shape_cast %476 : vector<1x1x20x20xf32> to vector<1x20x20xf32>
    %478 = vector.broadcast %475 : f32 to vector<1x20x20xf32>
    %479 = arith.mulf %478, %477 : vector<1x20x20xf32>
    %480 = arith.addf %474, %479 : vector<1x20x20xf32>
    %c80 = arith.constant 80 : index
    %481 = memref.load %arg1[%c80] : memref<100xf32, #tpu.memory_space<smem>>
    %c0_320 = arith.constant 0 : index
    %c0_321 = arith.constant 0 : index
    %c4_322 = arith.constant 4 : index
    %c0_323 = arith.constant 0 : index
    %482 = vector.load %arg2[%c0_320, %c0_321, %c4_322, %c0_323] : memref<1x4x24x24xf32, #tpu.memory_space<vmem>>, vector<1x1x20x20xf32>
    %483 = vector.shape_cast %482 : vector<1x1x20x20xf32> to vector<1x20x20xf32>
    %484 = vector.broadcast %481 : f32 to vector<1x20x20xf32>
    %485 = arith.mulf %484, %483 : vector<1x20x20xf32>
    %486 = arith.addf %480, %485 : vector<1x20x20xf32>
    %c81 = arith.constant 81 : index
    %487 = memref.load %arg1[%c81] : memref<100xf32, #tpu.memory_space<smem>>
    %c0_324 = arith.constant 0 : index
    %c1_325 = arith.constant 1 : index
    %c4_326 = arith.constant 4 : index
    %c0_327 = arith.constant 0 : index
    %488 = vector.load %arg2[%c0_324, %c1_325, %c4_326, %c0_327] : memref<1x4x24x24xf32, #tpu.memory_space<vmem>>, vector<1x1x20x20xf32>
    %489 = vector.shape_cast %488 : vector<1x1x20x20xf32> to vector<1x20x20xf32>
    %490 = vector.broadcast %487 : f32 to vector<1x20x20xf32>
    %491 = arith.mulf %490, %489 : vector<1x20x20xf32>
    %492 = arith.addf %486, %491 : vector<1x20x20xf32>
    %c82 = arith.constant 82 : index
    %493 = memref.load %arg1[%c82] : memref<100xf32, #tpu.memory_space<smem>>
    %c0_328 = arith.constant 0 : index
    %c2_329 = arith.constant 2 : index
    %c4_330 = arith.constant 4 : index
    %c0_331 = arith.constant 0 : index
    %494 = vector.load %arg2[%c0_328, %c2_329, %c4_330, %c0_331] : memref<1x4x24x24xf32, #tpu.memory_space<vmem>>, vector<1x1x20x20xf32>
    %495 = vector.shape_cast %494 : vector<1x1x20x20xf32> to vector<1x20x20xf32>
    %496 = vector.broadcast %493 : f32 to vector<1x20x20xf32>
    %497 = arith.mulf %496, %495 : vector<1x20x20xf32>
    %498 = arith.addf %492, %497 : vector<1x20x20xf32>
    %c83 = arith.constant 83 : index
    %499 = memref.load %arg1[%c83] : memref<100xf32, #tpu.memory_space<smem>>
    %c0_332 = arith.constant 0 : index
    %c3_333 = arith.constant 3 : index
    %c4_334 = arith.constant 4 : index
    %c0_335 = arith.constant 0 : index
    %500 = vector.load %arg2[%c0_332, %c3_333, %c4_334, %c0_335] : memref<1x4x24x24xf32, #tpu.memory_space<vmem>>, vector<1x1x20x20xf32>
    %501 = vector.shape_cast %500 : vector<1x1x20x20xf32> to vector<1x20x20xf32>
    %502 = vector.broadcast %499 : f32 to vector<1x20x20xf32>
    %503 = arith.mulf %502, %501 : vector<1x20x20xf32>
    %504 = arith.addf %498, %503 : vector<1x20x20xf32>
    %c84 = arith.constant 84 : index
    %505 = memref.load %arg1[%c84] : memref<100xf32, #tpu.memory_space<smem>>
    %c0_336 = arith.constant 0 : index
    %c0_337 = arith.constant 0 : index
    %c4_338 = arith.constant 4 : index
    %c1_339 = arith.constant 1 : index
    %506 = vector.load %arg2[%c0_336, %c0_337, %c4_338, %c1_339] : memref<1x4x24x24xf32, #tpu.memory_space<vmem>>, vector<1x1x20x20xf32>
    %507 = vector.shape_cast %506 : vector<1x1x20x20xf32> to vector<1x20x20xf32>
    %508 = vector.broadcast %505 : f32 to vector<1x20x20xf32>
    %509 = arith.mulf %508, %507 : vector<1x20x20xf32>
    %510 = arith.addf %504, %509 : vector<1x20x20xf32>
    %c85 = arith.constant 85 : index
    %511 = memref.load %arg1[%c85] : memref<100xf32, #tpu.memory_space<smem>>
    %c0_340 = arith.constant 0 : index
    %c1_341 = arith.constant 1 : index
    %c4_342 = arith.constant 4 : index
    %c1_343 = arith.constant 1 : index
    %512 = vector.load %arg2[%c0_340, %c1_341, %c4_342, %c1_343] : memref<1x4x24x24xf32, #tpu.memory_space<vmem>>, vector<1x1x20x20xf32>
    %513 = vector.shape_cast %512 : vector<1x1x20x20xf32> to vector<1x20x20xf32>
    %514 = vector.broadcast %511 : f32 to vector<1x20x20xf32>
    %515 = arith.mulf %514, %513 : vector<1x20x20xf32>
    %516 = arith.addf %510, %515 : vector<1x20x20xf32>
    %c86 = arith.constant 86 : index
    %517 = memref.load %arg1[%c86] : memref<100xf32, #tpu.memory_space<smem>>
    %c0_344 = arith.constant 0 : index
    %c2_345 = arith.constant 2 : index
    %c4_346 = arith.constant 4 : index
    %c1_347 = arith.constant 1 : index
    %518 = vector.load %arg2[%c0_344, %c2_345, %c4_346, %c1_347] : memref<1x4x24x24xf32, #tpu.memory_space<vmem>>, vector<1x1x20x20xf32>
    %519 = vector.shape_cast %518 : vector<1x1x20x20xf32> to vector<1x20x20xf32>
    %520 = vector.broadcast %517 : f32 to vector<1x20x20xf32>
    %521 = arith.mulf %520, %519 : vector<1x20x20xf32>
    %522 = arith.addf %516, %521 : vector<1x20x20xf32>
    %c87 = arith.constant 87 : index
    %523 = memref.load %arg1[%c87] : memref<100xf32, #tpu.memory_space<smem>>
    %c0_348 = arith.constant 0 : index
    %c3_349 = arith.constant 3 : index
    %c4_350 = arith.constant 4 : index
    %c1_351 = arith.constant 1 : index
    %524 = vector.load %arg2[%c0_348, %c3_349, %c4_350, %c1_351] : memref<1x4x24x24xf32, #tpu.memory_space<vmem>>, vector<1x1x20x20xf32>
    %525 = vector.shape_cast %524 : vector<1x1x20x20xf32> to vector<1x20x20xf32>
    %526 = vector.broadcast %523 : f32 to vector<1x20x20xf32>
    %527 = arith.mulf %526, %525 : vector<1x20x20xf32>
    %528 = arith.addf %522, %527 : vector<1x20x20xf32>
    %c88 = arith.constant 88 : index
    %529 = memref.load %arg1[%c88] : memref<100xf32, #tpu.memory_space<smem>>
    %c0_352 = arith.constant 0 : index
    %c0_353 = arith.constant 0 : index
    %c4_354 = arith.constant 4 : index
    %c2_355 = arith.constant 2 : index
    %530 = vector.load %arg2[%c0_352, %c0_353, %c4_354, %c2_355] : memref<1x4x24x24xf32, #tpu.memory_space<vmem>>, vector<1x1x20x20xf32>
    %531 = vector.shape_cast %530 : vector<1x1x20x20xf32> to vector<1x20x20xf32>
    %532 = vector.broadcast %529 : f32 to vector<1x20x20xf32>
    %533 = arith.mulf %532, %531 : vector<1x20x20xf32>
    %534 = arith.addf %528, %533 : vector<1x20x20xf32>
    %c89 = arith.constant 89 : index
    %535 = memref.load %arg1[%c89] : memref<100xf32, #tpu.memory_space<smem>>
    %c0_356 = arith.constant 0 : index
    %c1_357 = arith.constant 1 : index
    %c4_358 = arith.constant 4 : index
    %c2_359 = arith.constant 2 : index
    %536 = vector.load %arg2[%c0_356, %c1_357, %c4_358, %c2_359] : memref<1x4x24x24xf32, #tpu.memory_space<vmem>>, vector<1x1x20x20xf32>
    %537 = vector.shape_cast %536 : vector<1x1x20x20xf32> to vector<1x20x20xf32>
    %538 = vector.broadcast %535 : f32 to vector<1x20x20xf32>
    %539 = arith.mulf %538, %537 : vector<1x20x20xf32>
    %540 = arith.addf %534, %539 : vector<1x20x20xf32>
    %c90 = arith.constant 90 : index
    %541 = memref.load %arg1[%c90] : memref<100xf32, #tpu.memory_space<smem>>
    %c0_360 = arith.constant 0 : index
    %c2_361 = arith.constant 2 : index
    %c4_362 = arith.constant 4 : index
    %c2_363 = arith.constant 2 : index
    %542 = vector.load %arg2[%c0_360, %c2_361, %c4_362, %c2_363] : memref<1x4x24x24xf32, #tpu.memory_space<vmem>>, vector<1x1x20x20xf32>
    %543 = vector.shape_cast %542 : vector<1x1x20x20xf32> to vector<1x20x20xf32>
    %544 = vector.broadcast %541 : f32 to vector<1x20x20xf32>
    %545 = arith.mulf %544, %543 : vector<1x20x20xf32>
    %546 = arith.addf %540, %545 : vector<1x20x20xf32>
    %c91 = arith.constant 91 : index
    %547 = memref.load %arg1[%c91] : memref<100xf32, #tpu.memory_space<smem>>
    %c0_364 = arith.constant 0 : index
    %c3_365 = arith.constant 3 : index
    %c4_366 = arith.constant 4 : index
    %c2_367 = arith.constant 2 : index
    %548 = vector.load %arg2[%c0_364, %c3_365, %c4_366, %c2_367] : memref<1x4x24x24xf32, #tpu.memory_space<vmem>>, vector<1x1x20x20xf32>
    %549 = vector.shape_cast %548 : vector<1x1x20x20xf32> to vector<1x20x20xf32>
    %550 = vector.broadcast %547 : f32 to vector<1x20x20xf32>
    %551 = arith.mulf %550, %549 : vector<1x20x20xf32>
    %552 = arith.addf %546, %551 : vector<1x20x20xf32>
    %c92 = arith.constant 92 : index
    %553 = memref.load %arg1[%c92] : memref<100xf32, #tpu.memory_space<smem>>
    %c0_368 = arith.constant 0 : index
    %c0_369 = arith.constant 0 : index
    %c4_370 = arith.constant 4 : index
    %c3_371 = arith.constant 3 : index
    %554 = vector.load %arg2[%c0_368, %c0_369, %c4_370, %c3_371] : memref<1x4x24x24xf32, #tpu.memory_space<vmem>>, vector<1x1x20x20xf32>
    %555 = vector.shape_cast %554 : vector<1x1x20x20xf32> to vector<1x20x20xf32>
    %556 = vector.broadcast %553 : f32 to vector<1x20x20xf32>
    %557 = arith.mulf %556, %555 : vector<1x20x20xf32>
    %558 = arith.addf %552, %557 : vector<1x20x20xf32>
    %c93 = arith.constant 93 : index
    %559 = memref.load %arg1[%c93] : memref<100xf32, #tpu.memory_space<smem>>
    %c0_372 = arith.constant 0 : index
    %c1_373 = arith.constant 1 : index
    %c4_374 = arith.constant 4 : index
    %c3_375 = arith.constant 3 : index
    %560 = vector.load %arg2[%c0_372, %c1_373, %c4_374, %c3_375] : memref<1x4x24x24xf32, #tpu.memory_space<vmem>>, vector<1x1x20x20xf32>
    %561 = vector.shape_cast %560 : vector<1x1x20x20xf32> to vector<1x20x20xf32>
    %562 = vector.broadcast %559 : f32 to vector<1x20x20xf32>
    %563 = arith.mulf %562, %561 : vector<1x20x20xf32>
    %564 = arith.addf %558, %563 : vector<1x20x20xf32>
    %c94 = arith.constant 94 : index
    %565 = memref.load %arg1[%c94] : memref<100xf32, #tpu.memory_space<smem>>
    %c0_376 = arith.constant 0 : index
    %c2_377 = arith.constant 2 : index
    %c4_378 = arith.constant 4 : index
    %c3_379 = arith.constant 3 : index
    %566 = vector.load %arg2[%c0_376, %c2_377, %c4_378, %c3_379] : memref<1x4x24x24xf32, #tpu.memory_space<vmem>>, vector<1x1x20x20xf32>
    %567 = vector.shape_cast %566 : vector<1x1x20x20xf32> to vector<1x20x20xf32>
    %568 = vector.broadcast %565 : f32 to vector<1x20x20xf32>
    %569 = arith.mulf %568, %567 : vector<1x20x20xf32>
    %570 = arith.addf %564, %569 : vector<1x20x20xf32>
    %c95 = arith.constant 95 : index
    %571 = memref.load %arg1[%c95] : memref<100xf32, #tpu.memory_space<smem>>
    %c0_380 = arith.constant 0 : index
    %c3_381 = arith.constant 3 : index
    %c4_382 = arith.constant 4 : index
    %c3_383 = arith.constant 3 : index
    %572 = vector.load %arg2[%c0_380, %c3_381, %c4_382, %c3_383] : memref<1x4x24x24xf32, #tpu.memory_space<vmem>>, vector<1x1x20x20xf32>
    %573 = vector.shape_cast %572 : vector<1x1x20x20xf32> to vector<1x20x20xf32>
    %574 = vector.broadcast %571 : f32 to vector<1x20x20xf32>
    %575 = arith.mulf %574, %573 : vector<1x20x20xf32>
    %576 = arith.addf %570, %575 : vector<1x20x20xf32>
    %c96 = arith.constant 96 : index
    %577 = memref.load %arg1[%c96] : memref<100xf32, #tpu.memory_space<smem>>
    %c0_384 = arith.constant 0 : index
    %c0_385 = arith.constant 0 : index
    %c4_386 = arith.constant 4 : index
    %c4_387 = arith.constant 4 : index
    %578 = vector.load %arg2[%c0_384, %c0_385, %c4_386, %c4_387] : memref<1x4x24x24xf32, #tpu.memory_space<vmem>>, vector<1x1x20x20xf32>
    %579 = vector.shape_cast %578 : vector<1x1x20x20xf32> to vector<1x20x20xf32>
    %580 = vector.broadcast %577 : f32 to vector<1x20x20xf32>
    %581 = arith.mulf %580, %579 : vector<1x20x20xf32>
    %582 = arith.addf %576, %581 : vector<1x20x20xf32>
    %c97 = arith.constant 97 : index
    %583 = memref.load %arg1[%c97] : memref<100xf32, #tpu.memory_space<smem>>
    %c0_388 = arith.constant 0 : index
    %c1_389 = arith.constant 1 : index
    %c4_390 = arith.constant 4 : index
    %c4_391 = arith.constant 4 : index
    %584 = vector.load %arg2[%c0_388, %c1_389, %c4_390, %c4_391] : memref<1x4x24x24xf32, #tpu.memory_space<vmem>>, vector<1x1x20x20xf32>
    %585 = vector.shape_cast %584 : vector<1x1x20x20xf32> to vector<1x20x20xf32>
    %586 = vector.broadcast %583 : f32 to vector<1x20x20xf32>
    %587 = arith.mulf %586, %585 : vector<1x20x20xf32>
    %588 = arith.addf %582, %587 : vector<1x20x20xf32>
    %c98 = arith.constant 98 : index
    %589 = memref.load %arg1[%c98] : memref<100xf32, #tpu.memory_space<smem>>
    %c0_392 = arith.constant 0 : index
    %c2_393 = arith.constant 2 : index
    %c4_394 = arith.constant 4 : index
    %c4_395 = arith.constant 4 : index
    %590 = vector.load %arg2[%c0_392, %c2_393, %c4_394, %c4_395] : memref<1x4x24x24xf32, #tpu.memory_space<vmem>>, vector<1x1x20x20xf32>
    %591 = vector.shape_cast %590 : vector<1x1x20x20xf32> to vector<1x20x20xf32>
    %592 = vector.broadcast %589 : f32 to vector<1x20x20xf32>
    %593 = arith.mulf %592, %591 : vector<1x20x20xf32>
    %594 = arith.addf %588, %593 : vector<1x20x20xf32>
    %c99 = arith.constant 99 : index
    %595 = memref.load %arg1[%c99] : memref<100xf32, #tpu.memory_space<smem>>
    %c0_396 = arith.constant 0 : index
    %c3_397 = arith.constant 3 : index
    %c4_398 = arith.constant 4 : index
    %c4_399 = arith.constant 4 : index
    %596 = vector.load %arg2[%c0_396, %c3_397, %c4_398, %c4_399] : memref<1x4x24x24xf32, #tpu.memory_space<vmem>>, vector<1x1x20x20xf32>
    %597 = vector.shape_cast %596 : vector<1x1x20x20xf32> to vector<1x20x20xf32>
    %598 = vector.broadcast %595 : f32 to vector<1x20x20xf32>
    %599 = arith.mulf %598, %597 : vector<1x20x20xf32>
    %600 = arith.addf %594, %599 : vector<1x20x20xf32>
    %c0_400 = arith.constant 0 : index
    %c0_401 = arith.constant 0 : index
    %601 = vector.load %arg3[%c0_400, %c0_401] : memref<20x20xf32, #tpu.memory_space<vmem>>, vector<20x20xf32>
    %602 = vector.shape_cast %601 : vector<20x20xf32> to vector<1x20x20xf32>
    %603 = arith.addf %600, %602 : vector<1x20x20xf32>
    %c0_402 = arith.constant 0 : index
    %c0_403 = arith.constant 0 : index
    %c0_404 = arith.constant 0 : index
    %604 = vector.load %arg4[%c0_402, %c0_403, %c0_404] : memref<1x20x20xf32, #tpu.memory_space<vmem>>, vector<1x20x20xf32>
    tpu.vector_store %arg4[%c0_402, %c0_403, %c0_404], %603 {strides = array<i32>} : memref<1x20x20xf32, #tpu.memory_space<vmem>>, vector<1x20x20xf32>,
    return
  }
  func.func @transform_0(%arg0: i32) -> i32 {
    %c0_i32 = arith.constant 0 : i32
    %c0_i32_0 = arith.constant 0 : i32
    return %c0_i32 : i32
  }
  func.func @transform_1(%arg0: i32) -> (i32, i32, i32, i32) {
    %c0_i32 = arith.constant 0 : i32
    %c0_i32_0 = arith.constant 0 : i32
    %c0_i32_1 = arith.constant 0 : i32
    %c0_i32_2 = arith.constant 0 : i32
    return %arg0, %c0_i32, %c0_i32_0, %c0_i32_1 : i32, i32, i32, i32
  }
  func.func @transform_2(%arg0: i32) -> (i32, i32) {
    %c0_i32 = arith.constant 0 : i32
    %c0_i32_0 = arith.constant 0 : i32
    %c0_i32_1 = arith.constant 0 : i32
    return %c0_i32, %c0_i32_0 : i32, i32
  }
  func.func @transform_3(%arg0: i32) -> (i32, i32, i32) {
    %c0_i32 = arith.constant 0 : i32
    %c0_i32_0 = arith.constant 0 : i32
    %c0_i32_1 = arith.constant 0 : i32
    return %arg0, %c0_i32, %c0_i32_0 : i32, i32, i32
  }
}

</mosaic_0001>

<llo_original>
// kernel: decoder_forward.1
$region0: #{decoder_forward.1}
  #allocation0 [shape = 'u32[]', space=smem, size = 0x4, offset = 0x4, fixed_abs, tag = 'smem constant byte address 0x4 - core index']
  #allocation1 [shape = 'u32[72,128]{1,0:T(1,128)}', space=vmem, size = 0x9000, scoped, tag = 'internal scratch']
  %s0 = inlined_call_operand.vmem [shape: f32[100], index: 0, kind: input, shape index: {}]
  %s1 = inlined_call_operand.vmem [shape: f32[2,4,24,24], index: 1, kind: input, shape index: {}]
  %s2 = inlined_call_operand.vmem [shape: f32[20,20], index: 2, kind: input, shape index: {}]
  %s3 = inlined_call_operand.vmem [shape: f32[2,20,20], index: 3, kind: output, shape index: {}]
  %s4 = sld [smem:[#allocation0]]
  $region49: #{decoder_forward.1} parent=0
    _
  %s6 = ssub.s32 1, %s4
  %s7 = scalar_select 0, %s6, %s4
  $region1: #{decoder_forward.1} parent=0
    #allocation2 [shape = 'u8[512]{0}', space=smem, size = 0x200, scoped, tag = 'input window, operand 0, single buffered']
    #allocation3 [shape = 's32[2]{0}', space=sflag, size = 0x8, scoped, tag = 'scoped memory for decoder_forward.1']
    %8 = vsyncpa [#allocation3], 0
    loop: start=0, step=1, limit=4
    $region2: #{decoder_forward.1} parent=1 // loop_pre_header
      _
    $region3: #{decoder_forward.1} parent=1 // loop_header
      %s10 = sphi 0, %s14
      %p11 = scmp.ge.s32.totalorder %s10, 4
      %s18 = sphi 0, %s18
      %s20 = sphi 0, %s18
      %s21 = sphi 0, %s20
      %s35 = sphi 0, %s21
      %s41 = sphi 0, %s43
      %s44 = sphi 0, %s41
      %s45 = sphi 0, %s44
      %s61 = sphi 0, %s45
      %s65 = sphi 0, %s65
      %s67 = sphi 0, %s65
      %s68 = sphi 0, %s67
      %s82 = sphi 0, %s68
      %s88 = sphi 0, %s90
      %s91 = sphi 0, %s88
      %s92 = sphi 0, %s91
      %s108 = sphi 0, %s92
    $region4: #{decoder_forward.1} parent=1 // loop_header_branch
      %13 = sbr.rel (%p11) target = $region8
    $region5: #{decoder_forward.1} parent=1 // loop_body
      %s15 = ssub.s32 %s10, 1
      %s16 = ssub.s32 %s10, 2
      %s17 = sadd.s32 %s10, 1
      %s19 = sadd.s32 %s18, 1
      %p22 = scmp.eq.s32.totalorder %s10, 1
      %p23 = scmp.ne.s32.totalorder %s18, %s20
      %p24 = scmp.eq.s32.totalorder %s10, 0
      %p25 = por %p23, %p24
      %p26 = scmp.ne.s32.totalorder %s18, %s20
      %p27 = scmp.eq.s32.totalorder %s15, 1
      %p28 = por %p26, %p27
      %p29 = scmp.ne.s32.totalorder %s20, %s21
      %p30 = scmp.eq.s32.totalorder %s15, 0
      %p31 = por %p29, %p30
      %p32 = scmp.ne.s32.totalorder %s20, %s21
      %p33 = scmp.eq.s32.totalorder %s16, 1
      %p34 = por %p32, %p33
      %p36 = scmp.ne.s32.totalorder %s21, %s35
      %p37 = scmp.eq.s32.totalorder %s16, 0
      %p38 = por %p36, %p37
      %s39 = ssub.s32 %s10, %s17
      %p40 = scmp.eq.s32.totalorder %s39, 0
      %s42 = sadd.s32 %s41, 1
      %s43 = scalar_select %p40, %s41, %s42
      %p46 = pneg %p40
      %p47 = scmp.eq.s32.totalorder %s10, 1
      %p48 = por %p46, %p47
      %p49 = scmp.ne.s32.totalorder %s41, %s44
      %p50 = scmp.eq.s32.totalorder %s10, 0
      %p51 = por %p49, %p50
      %p52 = scmp.ne.s32.totalorder %s41, %s44
      %p53 = scmp.eq.s32.totalorder %s15, 1
      %p54 = por %p52, %p53
      %p55 = scmp.ne.s32.totalorder %s44, %s45
      %p56 = scmp.eq.s32.totalorder %s15, 0
      %p57 = por %p55, %p56
      %p58 = scmp.ne.s32.totalorder %s44, %s45
      %p59 = scmp.eq.s32.totalorder %s16, 1
      %p60 = por %p58, %p59
      %p62 = scmp.ne.s32.totalorder %s45, %s61
      %p63 = scmp.eq.s32.totalorder %s16, 0
      %p64 = por %p62, %p63
      %s66 = sadd.s32 %s65, 1
      %p69 = scmp.eq.s32.totalorder %s10, 1
      %p70 = scmp.ne.s32.totalorder %s65, %s67
      %p71 = scmp.eq.s32.totalorder %s10, 0
      %p72 = por %p70, %p71
      %p73 = scmp.ne.s32.totalorder %s65, %s67
      %p74 = scmp.eq.s32.totalorder %s15, 1
      %p75 = por %p73, %p74
      %p76 = scmp.ne.s32.totalorder %s67, %s68
      %p77 = scmp.eq.s32.totalorder %s15, 0
      %p78 = por %p76, %p77
      %p79 = scmp.ne.s32.totalorder %s67, %s68
      %p80 = scmp.eq.s32.totalorder %s16, 1
      %p81 = por %p79, %p80
      %p83 = scmp.ne.s32.totalorder %s68, %s82
      %p84 = scmp.eq.s32.totalorder %s16, 0
      %p85 = por %p83, %p84
      %s86 = ssub.s32 %s10, %s17
      %p87 = scmp.eq.s32.totalorder %s86, 0
      %s89 = sadd.s32 %s88, 1
      %s90 = scalar_select %p87, %s88, %s89
      %p93 = pneg %p87
      %p94 = scmp.eq.s32.totalorder %s10, 1
      %p95 = por %p93, %p94
      %p96 = scmp.ne.s32.totalorder %s88, %s91
      %p97 = scmp.eq.s32.totalorder %s10, 0
      %p98 = por %p96, %p97
      %p99 = scmp.ne.s32.totalorder %s88, %s91
      %p100 = scmp.eq.s32.totalorder %s15, 1
      %p101 = por %p99, %p100
      %p102 = scmp.ne.s32.totalorder %s91, %s92
      %p103 = scmp.eq.s32.totalorder %s15, 0
      %p104 = por %p102, %p103
      %p105 = scmp.ne.s32.totalorder %s91, %s92
      %p106 = scmp.eq.s32.totalorder %s16, 1
      %p107 = por %p105, %p106
      %p109 = scmp.ne.s32.totalorder %s92, %s108
      %p110 = scmp.eq.s32.totalorder %s16, 0
      %p111 = por %p109, %p110
      %p112 = scmp.le.s32.totalorder 1, %s10
      %p113 = scmp.lt.s32.totalorder %s10, 3
      %p114 = pnand %p112, %p113
      %p115 = pneg %p114
      // Predicated region
      $region9: #{decoder_forward.1} parent=5 // pred_check
        _
      $region10: #{decoder_forward.1} parent=5 // pred_check_branch
        %117 = sbr.rel (%p114) target = $region12
      $region11: #{decoder_forward.1} parent=5 // pred_region
        %s118 = ssub.s32 %s10, 1
        // Predicated region
        $region13: #{decoder_forward.1} parent=11 // pred_check
          %p119 = pneg %p31
        $region14: #{decoder_forward.1} parent=11 // pred_check_branch
          %121 = sbr.rel (%p119) target = $region16
        $region15: #{decoder_forward.1} parent=11 // pred_region
          %123 = vsyncadd [#allocation3], 0
          %s125 = sshll.u32 %s0, 4
          %s126 = int_to_ptr.vmem [resolvable:$true] %s125
          %128 = dma.vmem_to_smem %s126, 16, [#allocation2], [#allocation3]
        $region16: #{decoder_forward.1} parent=11 // pred_fallthru
          _
        // Predicated region
        $region17: #{decoder_forward.1} parent=11 // pred_check
          %p129 = pneg %p78
        $region18: #{decoder_forward.1} parent=11 // pred_check_branch
          %131 = sbr.rel (%p129) target = $region20
        $region19: #{decoder_forward.1} parent=11 // pred_region
          _
        $region20: #{decoder_forward.1} parent=11 // pred_fallthru
          _
      $region12: #{decoder_forward.1} parent=5 // pred_fallthru
        _
      %p132 = scmp.lt.s32.totalorder %s10, 2
      // Predicated region
      $region21: #{decoder_forward.1} parent=5 // pred_check
        %p133 = pneg %p132
      $region22: #{decoder_forward.1} parent=5 // pred_check_branch
        %135 = sbr.rel (%p133) target = $region24
      $region23: #{decoder_forward.1} parent=5 // pred_region
        // Predicated region
        $region25: #{decoder_forward.1} parent=23 // pred_check
          %p136 = pneg %p51
        $region26: #{decoder_forward.1} parent=23 // pred_check_branch
          %138 = sbr.rel (%p136) target = $region28
        $region27: #{decoder_forward.1} parent=23 // pred_region
          %p139 = scmp.lt.s32.totalorder %s10, 1
          %s140 = scalar_select %p139, %s10, 1
          %s141 = smul.addr %s140, 12
          %s142 = smul.addr %s141, 8
          %s143 = scalar_lea.vmem %s1, %s142
        $region28: #{decoder_forward.1} parent=23 // pred_fallthru
          _
      $region24: #{decoder_forward.1} parent=5 // pred_fallthru
        _
      %p144 = scmp.le.s32.totalorder 1, %s10
      %p145 = scmp.lt.s32.totalorder %s10, 3
      %p146 = pnand %p144, %p145
      %p147 = pneg %p146
      // Predicated region
      $region29: #{decoder_forward.1} parent=5 // pred_check
        _
      $region30: #{decoder_forward.1} parent=5 // pred_check_branch
        %149 = sbr.rel (%p146) target = $region32
      $region31: #{decoder_forward.1} parent=5 // pred_region
        %s150 = ssub.s32 %s10, 1
        // Predicated region
        $region33: #{decoder_forward.1} parent=31 // pred_check
          %p151 = pneg %p31
        $region34: #{decoder_forward.1} parent=31 // pred_check_branch
          %153 = sbr.rel (%p151) target = $region36
        $region35: #{decoder_forward.1} parent=31 // pred_region
          %155 = dma.done [#allocation3], 16
        $region36: #{decoder_forward.1} parent=31 // pred_fallthru
          _
        %156 = sfence
        %p157 = pneg %p31
        %p158 = pneg %p28
        %p159 = scmp.lt.s32.totalorder %s15, 1
        %s160 = scalar_select %p159, %s15, 1
        %s161 = smul.addr %s160, 12
        %s162 = smul.addr %s161, 8
        %s163 = scalar_lea.vmem %s1, %s162
        %p164 = pneg %p57
        %p165 = pneg %p54
        %p166 = pneg %p78
        %p167 = pneg %p75
        %p168 = pneg %p104
        %p169 = pneg %p101
        %p170 = scmp.lt.s32.totalorder %s15, 1
        %s171 = scalar_select %p170, %s15, 1
        %s172 = smul.addr %s171, 3
        %s173 = smul.addr %s172, 8
        %s174 = scalar_lea.vmem %s3, %s173
        %p175 = scmp.lt.s32.totalorder %s15, 1
        %s176 = scalar_select %p175, %s15, 1
        %s177 = smul.addr %s176, 12
        %s178 = smul.addr %s177, 8
        %s179 = scalar_lea.vmem %s1, %s178
        %p180 = scmp.lt.s32.totalorder %s15, 1
        %s181 = scalar_select %p180, %s15, 1
        %s182 = smul.addr %s181, 3
        %s183 = smul.addr %s182, 8
        %s184 = scalar_lea.vmem %s3, %s183
        %s185 = sld [smem:[#allocation2]]
        %v186 = vld [vmem:[%s179] sm:$0xff]
        %v187 = vld [vmem:[%s179 + $0x8] sm:$0xff]
        %v188 = vld [vmem:[%s179 + $0x10] sm:$0xf]
        %v189 = vstv %s185
        %v190 = vmul.f32 %v189, %v186
        %v191 = vmul.f32 %v189, %v187
        %v192 = vmul.f32 %v189, %v188
        %v193 = vadd.f32 %v190, 0.0
        %v194 = vadd.f32 %v191, 0.0
        %v195 = vadd.f32 %v192, 0.0
        %s196 = sld [smem:[#allocation2 + $0x1]]
        %s197 = scalar_lea.vmem %s179, 24
        %v198 = vld [vmem:[%s197] sm:$0xff]
        %v199 = vld [vmem:[%s197 + $0x8] sm:$0xff]
        %v200 = vld [vmem:[%s197 + $0x10] sm:$0xf]
        %v201 = vstv %s196
        %v202 = vmul.f32 %v201, %v198
        %v203 = vmul.f32 %v201, %v199
        %v204 = vmul.f32 %v201, %v200
        %v205 = vadd.f32 %v193, %v202
        %v206 = vadd.f32 %v194, %v203
        %v207 = vadd.f32 %v195, %v204
        %s208 = sld [smem:[#allocation2 + $0x2]]
        %s209 = scalar_lea.vmem %s179, 48
        %v210 = vld [vmem:[%s209] sm:$0xff]
        %v211 = vld [vmem:[%s209 + $0x8] sm:$0xff]
        %v212 = vld [vmem:[%s209 + $0x10] sm:$0xf]
        %v213 = vstv %s208
        %v214 = vmul.f32 %v213, %v210
        %v215 = vmul.f32 %v213, %v211
        %v216 = vmul.f32 %v213, %v212
        %v217 = vadd.f32 %v205, %v214
        %v218 = vadd.f32 %v206, %v215
        %v219 = vadd.f32 %v207, %v216
        %s220 = sld [smem:[#allocation2 + $0x3]]
        %s221 = scalar_lea.vmem %s179, 72
        %v222 = vld [vmem:[%s221] sm:$0xff]
        %v223 = vld [vmem:[%s221 + $0x8] sm:$0xff]
        %v224 = vld [vmem:[%s221 + $0x10] sm:$0xf]
        %v225 = vstv %s220
        %v226 = vmul.f32 %v225, %v222
        %v227 = vmul.f32 %v225, %v223
        %v228 = vmul.f32 %v225, %v224
        %v229 = vadd.f32 %v217, %v226
        %v230 = vadd.f32 %v218, %v227
        %v231 = vadd.f32 %v219, %v228
        %s232 = sld [smem:[#allocation2 + $0x4]]
        %v233 = vstv %s232
        %v234 = vmul.f32 %v233, %v186
        %v235 = vmul.f32 %v233, %v187
        %v236 = vmul.f32 %v233, %v188
        %240 = vrot.lane.b32.xlu0 %v234, 127
        %v241 = vpop.permute.xlu0 %240
        %242 = vrot.lane.b32.xlu0 %v235, 127
        %v243 = vpop.permute.xlu0 %242
        %244 = vrot.lane.b32.xlu0 %v236, 127
        %v245 = vpop.permute.xlu0 %244
        %v249 = vadd.f32 %v229, %v241
        %v250 = vadd.f32 %v230, %v243
        %v251 = vadd.f32 %v231, %v245
        %s252 = sld [smem:[#allocation2 + $0x5]]
        %v253 = vstv %s252
        %v254 = vmul.f32 %v253, %v198
        %v255 = vmul.f32 %v253, %v199
        %v256 = vmul.f32 %v253, %v200
        %260 = vrot.lane.b32.xlu0 %v254, 127
        %v261 = vpop.permute.xlu0 %260
        %262 = vrot.lane.b32.xlu0 %v255, 127
        %v263 = vpop.permute.xlu0 %262
        %264 = vrot.lane.b32.xlu0 %v256, 127
        %v265 = vpop.permute.xlu0 %264
        %v269 = vadd.f32 %v249, %v261
        %v270 = vadd.f32 %v250, %v263
        %v271 = vadd.f32 %v251, %v265
        %s272 = sld [smem:[#allocation2 + $0x6]]
        %v273 = vstv %s272
        %v274 = vmul.f32 %v273, %v210
        %v275 = vmul.f32 %v273, %v211
        %v276 = vmul.f32 %v273, %v212
        %280 = vrot.lane.b32.xlu0 %v274, 127
        %v281 = vpop.permute.xlu0 %280
        %282 = vrot.lane.b32.xlu0 %v275, 127
        %v283 = vpop.permute.xlu0 %282
        %284 = vrot.lane.b32.xlu0 %v276, 127
        %v285 = vpop.permute.xlu0 %284
        %v289 = vadd.f32 %v269, %v281
        %v290 = vadd.f32 %v270, %v283
        %v291 = vadd.f32 %v271, %v285
        %s292 = sld [smem:[#allocation2 + $0x7]]
        %v293 = vstv %s292
        %v294 = vmul.f32 %v293, %v222
        %v295 = vmul.f32 %v293, %v223
        %v296 = vmul.f32 %v293, %v224
        %300 = vrot.lane.b32.xlu0 %v294, 127
        %v301 = vpop.permute.xlu0 %300
        %302 = vrot.lane.b32.xlu0 %v295, 127
        %v303 = vpop.permute.xlu0 %302
        %304 = vrot.lane.b32.xlu0 %v296, 127
        %v305 = vpop.permute.xlu0 %304
        %v309 = vadd.f32 %v289, %v301
        %v310 = vadd.f32 %v290, %v303
        %v311 = vadd.f32 %v291, %v305
        %s312 = sld [smem:[#allocation2 + $0x8]]
        %v313 = vstv %s312
        %v314 = vmul.f32 %v313, %v186
        %v315 = vmul.f32 %v313, %v187
        %v316 = vmul.f32 %v313, %v188
        %320 = vrot.lane.b32.xlu0 %v314, 126
        %v321 = vpop.permute.xlu0 %320
        %322 = vrot.lane.b32.xlu0 %v315, 126
        %v323 = vpop.permute.xlu0 %322
        %324 = vrot.lane.b32.xlu0 %v316, 126
        %v325 = vpop.permute.xlu0 %324
        %v329 = vadd.f32 %v309, %v321
        %v330 = vadd.f32 %v310, %v323
        %v331 = vadd.f32 %v311, %v325
        %s332 = sld [smem:[#allocation2 + $0x9]]
        %v333 = vstv %s332
        %v334 = vmul.f32 %v333, %v198
        %v335 = vmul.f32 %v333, %v199
        %v336 = vmul.f32 %v333, %v200
        %340 = vrot.lane.b32.xlu0 %v334, 126
        %v341 = vpop.permute.xlu0 %340
        %342 = vrot.lane.b32.xlu0 %v335, 126
        %v343 = vpop.permute.xlu0 %342
        %344 = vrot.lane.b32.xlu0 %v336, 126
        %v345 = vpop.permute.xlu0 %344
        %v349 = vadd.f32 %v329, %v341
        %v350 = vadd.f32 %v330, %v343
        %v351 = vadd.f32 %v331, %v345
        %s352 = sld [smem:[#allocation2 + $0xa]]
        %v353 = vstv %s352
        %v354 = vmul.f32 %v353, %v210
        %v355 = vmul.f32 %v353, %v211
        %v356 = vmul.f32 %v353, %v212
        %360 = vrot.lane.b32.xlu0 %v354, 126
        %v361 = vpop.permute.xlu0 %360
        %362 = vrot.lane.b32.xlu0 %v355, 126
        %v363 = vpop.permute.xlu0 %362
        %364 = vrot.lane.b32.xlu0 %v356, 126
        %v365 = vpop.permute.xlu0 %364
        %v369 = vadd.f32 %v349, %v361
        %v370 = vadd.f32 %v350, %v363
        %v371 = vadd.f32 %v351, %v365
        %s372 = sld [smem:[#allocation2 + $0xb]]
        %v373 = vstv %s372
        %v374 = vmul.f32 %v373, %v222
        %v375 = vmul.f32 %v373, %v223
        %v376 = vmul.f32 %v373, %v224
        %380 = vrot.lane.b32.xlu0 %v374, 126
        %v381 = vpop.permute.xlu0 %380
        %382 = vrot.lane.b32.xlu0 %v375, 126
        %v383 = vpop.permute.xlu0 %382
        %384 = vrot.lane.b32.xlu0 %v376, 126
        %v385 = vpop.permute.xlu0 %384
        %v389 = vadd.f32 %v369, %v381
        %v390 = vadd.f32 %v370, %v383
        %v391 = vadd.f32 %v371, %v385
        %s392 = sld [smem:[#allocation2 + $0xc]]
        %v393 = vstv %s392
        %v394 = vmul.f32 %v393, %v186
        %v395 = vmul.f32 %v393, %v187
        %v396 = vmul.f32 %v393, %v188
        %400 = vrot.lane.b32.xlu0 %v394, 125
        %v401 = vpop.permute.xlu0 %400
        %402 = vrot.lane.b32.xlu0 %v395, 125
        %v403 = vpop.permute.xlu0 %402
        %404 = vrot.lane.b32.xlu0 %v396, 125
        %v405 = vpop.permute.xlu0 %404
        %v409 = vadd.f32 %v389, %v401
        %v410 = vadd.f32 %v390, %v403
        %v411 = vadd.f32 %v391, %v405
        %s412 = sld [smem:[#allocation2 + $0xd]]
        %v413 = vstv %s412
        %v414 = vmul.f32 %v413, %v198
        %v415 = vmul.f32 %v413, %v199
        %v416 = vmul.f32 %v413, %v200
        %420 = vrot.lane.b32.xlu0 %v414, 125
        %v421 = vpop.permute.xlu0 %420
        %422 = vrot.lane.b32.xlu0 %v415, 125
        %v423 = vpop.permute.xlu0 %422
        %424 = vrot.lane.b32.xlu0 %v416, 125
        %v425 = vpop.permute.xlu0 %424
        %v429 = vadd.f32 %v409, %v421
        %v430 = vadd.f32 %v410, %v423
        %v431 = vadd.f32 %v411, %v425
        %s432 = sld [smem:[#allocation2 + $0xe]]
        %v433 = vstv %s432
        %v434 = vmul.f32 %v433, %v210
        %v435 = vmul.f32 %v433, %v211
        %v436 = vmul.f32 %v433, %v212
        %440 = vrot.lane.b32.xlu0 %v434, 125
        %v441 = vpop.permute.xlu0 %440
        %442 = vrot.lane.b32.xlu0 %v435, 125
        %v443 = vpop.permute.xlu0 %442
        %444 = vrot.lane.b32.xlu0 %v436, 125
        %v445 = vpop.permute.xlu0 %444
        %v449 = vadd.f32 %v429, %v441
        %v450 = vadd.f32 %v430, %v443
        %v451 = vadd.f32 %v431, %v445
        %s452 = sld [smem:[#allocation2 + $0xf]]
        %v453 = vstv %s452
        %v454 = vmul.f32 %v453, %v222
        %v455 = vmul.f32 %v453, %v223
        %v456 = vmul.f32 %v453, %v224
        %460 = vrot.lane.b32.xlu0 %v454, 125
        %v461 = vpop.permute.xlu0 %460
        %462 = vrot.lane.b32.xlu0 %v455, 125
        %v463 = vpop.permute.xlu0 %462
        %464 = vrot.lane.b32.xlu0 %v456, 125
        %v465 = vpop.permute.xlu0 %464
        %v469 = vadd.f32 %v449, %v461
        %v470 = vadd.f32 %v450, %v463
        %v471 = vadd.f32 %v451, %v465
        %s472 = sld [smem:[#allocation2 + $0x10]]
        %v473 = vstv %s472
        %v474 = vmul.f32 %v473, %v186
        %v475 = vmul.f32 %v473, %v187
        %v476 = vmul.f32 %v473, %v188
        %480 = vrot.lane.b32.xlu0 %v474, 124
        %v481 = vpop.permute.xlu0 %480
        %482 = vrot.lane.b32.xlu0 %v475, 124
        %v483 = vpop.permute.xlu0 %482
        %484 = vrot.lane.b32.xlu0 %v476, 124
        %v485 = vpop.permute.xlu0 %484
        %v489 = vadd.f32 %v469, %v481
        %v490 = vadd.f32 %v470, %v483
        %v491 = vadd.f32 %v471, %v485
        %s492 = sld [smem:[#allocation2 + $0x11]]
        %v493 = vstv %s492
        %v494 = vmul.f32 %v493, %v198
        %v495 = vmul.f32 %v493, %v199
        %v496 = vmul.f32 %v493, %v200
        %500 = vrot.lane.b32.xlu0 %v494, 124
        %v501 = vpop.permute.xlu0 %500
        %502 = vrot.lane.b32.xlu0 %v495, 124
        %v503 = vpop.permute.xlu0 %502
        %504 = vrot.lane.b32.xlu0 %v496, 124
        %v505 = vpop.permute.xlu0 %504
        %v509 = vadd.f32 %v489, %v501
        %v510 = vadd.f32 %v490, %v503
        %v511 = vadd.f32 %v491, %v505
        %s512 = sld [smem:[#allocation2 + $0x12]]
        %v513 = vstv %s512
        %v514 = vmul.f32 %v513, %v210
        %v515 = vmul.f32 %v513, %v211
        %v516 = vmul.f32 %v513, %v212
        %520 = vrot.lane.b32.xlu0 %v514, 124
        %v521 = vpop.permute.xlu0 %520
        %522 = vrot.lane.b32.xlu0 %v515, 124
        %v523 = vpop.permute.xlu0 %522
        %524 = vrot.lane.b32.xlu0 %v516, 124
        %v525 = vpop.permute.xlu0 %524
        %v529 = vadd.f32 %v509, %v521
        %v530 = vadd.f32 %v510, %v523
        %v531 = vadd.f32 %v511, %v525
        %s532 = sld [smem:[#allocation2 + $0x13]]
        %v533 = vstv %s532
        %v534 = vmul.f32 %v533, %v222
        %v535 = vmul.f32 %v533, %v223
        %v536 = vmul.f32 %v533, %v224
        %540 = vrot.lane.b32.xlu0 %v534, 124
        %v541 = vpop.permute.xlu0 %540
        %542 = vrot.lane.b32.xlu0 %v535, 124
        %v543 = vpop.permute.xlu0 %542
        %544 = vrot.lane.b32.xlu0 %v536, 124
        %v545 = vpop.permute.xlu0 %544
        %v549 = vadd.f32 %v529, %v541
        %v550 = vadd.f32 %v530, %v543
        %v551 = vadd.f32 %v531, %v545
        %s552 = sld [smem:[#allocation2 + $0x14]]
        %v553 = vld [vmem:[%s179 + $0x1] sm:$0xff]
        %v554 = vld [vmem:[%s179 + $0x9] sm:$0xff]
        %v555 = vld [vmem:[%s179 + $0x11] sm:$0xf]
        %v556 = vstv %s552
        %v557 = vmul.f32 %v556, %v553
        %v558 = vmul.f32 %v556, %v554
        %v559 = vmul.f32 %v556, %v555
        %v560 = vadd.f32 %v549, %v557
        %v561 = vadd.f32 %v550, %v558
        %v562 = vadd.f32 %v551, %v559
        %s563 = sld [smem:[#allocation2 + $0x15]]
        %v564 = vld [vmem:[%s197 + $0x1] sm:$0xff]
        %v565 = vld [vmem:[%s197 + $0x9] sm:$0xff]
        %v566 = vld [vmem:[%s197 + $0x11] sm:$0xf]
        %v567 = vstv %s563
        %v568 = vmul.f32 %v567, %v564
        %v569 = vmul.f32 %v567, %v565
        %v570 = vmul.f32 %v567, %v566
        %v571 = vadd.f32 %v560, %v568
        %v572 = vadd.f32 %v561, %v569
        %v573 = vadd.f32 %v562, %v570
        %s574 = sld [smem:[#allocation2 + $0x16]]
        %v575 = vld [vmem:[%s209 + $0x1] sm:$0xff]
        %v576 = vld [vmem:[%s209 + $0x9] sm:$0xff]
        %v577 = vld [vmem:[%s209 + $0x11] sm:$0xf]
        %v578 = vstv %s574
        %v579 = vmul.f32 %v578, %v575
        %v580 = vmul.f32 %v578, %v576
        %v581 = vmul.f32 %v578, %v577
        %v582 = vadd.f32 %v571, %v579
        %v583 = vadd.f32 %v572, %v580
        %v584 = vadd.f32 %v573, %v581
        %s585 = sld [smem:[#allocation2 + $0x17]]
        %v586 = vld [vmem:[%s221 + $0x1] sm:$0xff]
        %v587 = vld [vmem:[%s221 + $0x9] sm:$0xff]
        %v588 = vld [vmem:[%s221 + $0x11] sm:$0xf]
        %v589 = vstv %s585
        %v590 = vmul.f32 %v589, %v586
        %v591 = vmul.f32 %v589, %v587
        %v592 = vmul.f32 %v589, %v588
        %v593 = vadd.f32 %v582, %v590
        %v594 = vadd.f32 %v583, %v591
        %v595 = vadd.f32 %v584, %v592
        %s596 = sld [smem:[#allocation2 + $0x18]]
        %v597 = vstv %s596
        %v598 = vmul.f32 %v597, %v553
        %v599 = vmul.f32 %v597, %v554
        %v600 = vmul.f32 %v597, %v555
        %604 = vrot.lane.b32.xlu0 %v598, 127
        %v605 = vpop.permute.xlu0 %604
        %606 = vrot.lane.b32.xlu0 %v599, 127
        %v607 = vpop.permute.xlu0 %606
        %608 = vrot.lane.b32.xlu0 %v600, 127
        %v609 = vpop.permute.xlu0 %608
        %v613 = vadd.f32 %v593, %v605
        %v614 = vadd.f32 %v594, %v607
        %v615 = vadd.f32 %v595, %v609
        %s616 = sld [smem:[#allocation2 + $0x19]]
        %v617 = vstv %s616
        %v618 = vmul.f32 %v617, %v564
        %v619 = vmul.f32 %v617, %v565
        %v620 = vmul.f32 %v617, %v566
        %624 = vrot.lane.b32.xlu0 %v618, 127
        %v625 = vpop.permute.xlu0 %624
        %626 = vrot.lane.b32.xlu0 %v619, 127
        %v627 = vpop.permute.xlu0 %626
        %628 = vrot.lane.b32.xlu0 %v620, 127
        %v629 = vpop.permute.xlu0 %628
        %v633 = vadd.f32 %v613, %v625
        %v634 = vadd.f32 %v614, %v627
        %v635 = vadd.f32 %v615, %v629
        %s636 = sld [smem:[#allocation2 + $0x1a]]
        %v637 = vstv %s636
        %v638 = vmul.f32 %v637, %v575
        %v639 = vmul.f32 %v637, %v576
        %v640 = vmul.f32 %v637, %v577
        %644 = vrot.lane.b32.xlu0 %v638, 127
        %v645 = vpop.permute.xlu0 %644
        %646 = vrot.lane.b32.xlu0 %v639, 127
        %v647 = vpop.permute.xlu0 %646
        %648 = vrot.lane.b32.xlu0 %v640, 127
        %v649 = vpop.permute.xlu0 %648
        %v653 = vadd.f32 %v633, %v645
        %v654 = vadd.f32 %v634, %v647
        %v655 = vadd.f32 %v635, %v649
        %s656 = sld [smem:[#allocation2 + $0x1b]]
        %v657 = vstv %s656
        %v658 = vmul.f32 %v657, %v586
        %v659 = vmul.f32 %v657, %v587
        %v660 = vmul.f32 %v657, %v588
        %664 = vrot.lane.b32.xlu0 %v658, 127
        %v665 = vpop.permute.xlu0 %664
        %666 = vrot.lane.b32.xlu0 %v659, 127
        %v667 = vpop.permute.xlu0 %666
        %668 = vrot.lane.b32.xlu0 %v660, 127
        %v669 = vpop.permute.xlu0 %668
        %v673 = vadd.f32 %v653, %v665
        %v674 = vadd.f32 %v654, %v667
        %v675 = vadd.f32 %v655, %v669
        %s676 = sld [smem:[#allocation2 + $0x1c]]
        %v677 = vstv %s676
        %v678 = vmul.f32 %v677, %v553
        %v679 = vmul.f32 %v677, %v554
        %v680 = vmul.f32 %v677, %v555
        %684 = vrot.lane.b32.xlu0 %v678, 126
        %v685 = vpop.permute.xlu0 %684
        %686 = vrot.lane.b32.xlu0 %v679, 126
        %v687 = vpop.permute.xlu0 %686
        %688 = vrot.lane.b32.xlu0 %v680, 126
        %v689 = vpop.permute.xlu0 %688
        %v693 = vadd.f32 %v673, %v685
        %v694 = vadd.f32 %v674, %v687
        %v695 = vadd.f32 %v675, %v689
        %s696 = sld [smem:[#allocation2 + $0x1d]]
        %v697 = vstv %s696
        %v698 = vmul.f32 %v697, %v564
        %v699 = vmul.f32 %v697, %v565
        %v700 = vmul.f32 %v697, %v566
        %704 = vrot.lane.b32.xlu0 %v698, 126
        %v705 = vpop.permute.xlu0 %704
        %706 = vrot.lane.b32.xlu0 %v699, 126
        %v707 = vpop.permute.xlu0 %706
        %708 = vrot.lane.b32.xlu0 %v700, 126
        %v709 = vpop.permute.xlu0 %708
        %v713 = vadd.f32 %v693, %v705
        %v714 = vadd.f32 %v694, %v707
        %v715 = vadd.f32 %v695, %v709
        %s716 = sld [smem:[#allocation2 + $0x1e]]
        %v717 = vstv %s716
        %v718 = vmul.f32 %v717, %v575
        %v719 = vmul.f32 %v717, %v576
        %v720 = vmul.f32 %v717, %v577
        %724 = vrot.lane.b32.xlu0 %v718, 126
        %v725 = vpop.permute.xlu0 %724
        %726 = vrot.lane.b32.xlu0 %v719, 126
        %v727 = vpop.permute.xlu0 %726
        %728 = vrot.lane.b32.xlu0 %v720, 126
        %v729 = vpop.permute.xlu0 %728
        %v733 = vadd.f32 %v713, %v725
        %v734 = vadd.f32 %v714, %v727
        %v735 = vadd.f32 %v715, %v729
        %s736 = sld [smem:[#allocation2 + $0x1f]]
        %v737 = vstv %s736
        %v738 = vmul.f32 %v737, %v586
        %v739 = vmul.f32 %v737, %v587
        %v740 = vmul.f32 %v737, %v588
        %744 = vrot.lane.b32.xlu0 %v738, 126
        %v745 = vpop.permute.xlu0 %744
        %746 = vrot.lane.b32.xlu0 %v739, 126
        %v747 = vpop.permute.xlu0 %746
        %748 = vrot.lane.b32.xlu0 %v740, 126
        %v749 = vpop.permute.xlu0 %748
        %v753 = vadd.f32 %v733, %v745
        %v754 = vadd.f32 %v734, %v747
        %v755 = vadd.f32 %v735, %v749
        %s756 = sld [smem:[#allocation2 + $0x20]]
        %v757 = vstv %s756
        %v758 = vmul.f32 %v757, %v553
        %v759 = vmul.f32 %v757, %v554
        %v760 = vmul.f32 %v757, %v555
        %764 = vrot.lane.b32.xlu0 %v758, 125
        %v765 = vpop.permute.xlu0 %764
        %766 = vrot.lane.b32.xlu0 %v759, 125
        %v767 = vpop.permute.xlu0 %766
        %768 = vrot.lane.b32.xlu0 %v760, 125
        %v769 = vpop.permute.xlu0 %768
        %v773 = vadd.f32 %v753, %v765
        %v774 = vadd.f32 %v754, %v767
        %v775 = vadd.f32 %v755, %v769
        %s776 = sld [smem:[#allocation2 + $0x21]]
        %v777 = vstv %s776
        %v778 = vmul.f32 %v777, %v564
        %v779 = vmul.f32 %v777, %v565
        %v780 = vmul.f32 %v777, %v566
        %784 = vrot.lane.b32.xlu0 %v778, 125
        %v785 = vpop.permute.xlu0 %784
        %786 = vrot.lane.b32.xlu0 %v779, 125
        %v787 = vpop.permute.xlu0 %786
        %788 = vrot.lane.b32.xlu0 %v780, 125
        %v789 = vpop.permute.xlu0 %788
        %v793 = vadd.f32 %v773, %v785
        %v794 = vadd.f32 %v774, %v787
        %v795 = vadd.f32 %v775, %v789
        %s796 = sld [smem:[#allocation2 + $0x22]]
        %v797 = vstv %s796
        %v798 = vmul.f32 %v797, %v575
        %v799 = vmul.f32 %v797, %v576
        %v800 = vmul.f32 %v797, %v577
        %804 = vrot.lane.b32.xlu0 %v798, 125
        %v805 = vpop.permute.xlu0 %804
        %806 = vrot.lane.b32.xlu0 %v799, 125
        %v807 = vpop.permute.xlu0 %806
        %808 = vrot.lane.b32.xlu0 %v800, 125
        %v809 = vpop.permute.xlu0 %808
        %v813 = vadd.f32 %v793, %v805
        %v814 = vadd.f32 %v794, %v807
        %v815 = vadd.f32 %v795, %v809
        %s816 = sld [smem:[#allocation2 + $0x23]]
        %v817 = vstv %s816
        %v818 = vmul.f32 %v817, %v586
        %v819 = vmul.f32 %v817, %v587
        %v820 = vmul.f32 %v817, %v588
        %824 = vrot.lane.b32.xlu0 %v818, 125
        %v825 = vpop.permute.xlu0 %824
        %826 = vrot.lane.b32.xlu0 %v819, 125
        %v827 = vpop.permute.xlu0 %826
        %828 = vrot.lane.b32.xlu0 %v820, 125
        %v829 = vpop.permute.xlu0 %828
        %v833 = vadd.f32 %v813, %v825
        %v834 = vadd.f32 %v814, %v827
        %v835 = vadd.f32 %v815, %v829
        %s836 = sld [smem:[#allocation2 + $0x24]]
        %v837 = vstv %s836
        %v838 = vmul.f32 %v837, %v553
        %v839 = vmul.f32 %v837, %v554
        %v840 = vmul.f32 %v837, %v555
        %844 = vrot.lane.b32.xlu0 %v838, 124
        %v845 = vpop.permute.xlu0 %844
        %846 = vrot.lane.b32.xlu0 %v839, 124
        %v847 = vpop.permute.xlu0 %846
        %848 = vrot.lane.b32.xlu0 %v840, 124
        %v849 = vpop.permute.xlu0 %848
        %v853 = vadd.f32 %v833, %v845
        %v854 = vadd.f32 %v834, %v847
        %v855 = vadd.f32 %v835, %v849
        %s856 = sld [smem:[#allocation2 + $0x25]]
        %v857 = vstv %s856
        %v858 = vmul.f32 %v857, %v564
        %v859 = vmul.f32 %v857, %v565
        %v860 = vmul.f32 %v857, %v566
        %864 = vrot.lane.b32.xlu0 %v858, 124
        %v865 = vpop.permute.xlu0 %864
        %866 = vrot.lane.b32.xlu0 %v859, 124
        %v867 = vpop.permute.xlu0 %866
        %868 = vrot.lane.b32.xlu0 %v860, 124
        %v869 = vpop.permute.xlu0 %868
        %v873 = vadd.f32 %v853, %v865
        %v874 = vadd.f32 %v854, %v867
        %v875 = vadd.f32 %v855, %v869
        %s876 = sld [smem:[#allocation2 + $0x26]]
        %v877 = vstv %s876
        %v878 = vmul.f32 %v877, %v575
        %v879 = vmul.f32 %v877, %v576
        %v880 = vmul.f32 %v877, %v577
        %884 = vrot.lane.b32.xlu0 %v878, 124
        %v885 = vpop.permute.xlu0 %884
        %886 = vrot.lane.b32.xlu0 %v879, 124
        %v887 = vpop.permute.xlu0 %886
        %888 = vrot.lane.b32.xlu0 %v880, 124
        %v889 = vpop.permute.xlu0 %888
        %v893 = vadd.f32 %v873, %v885
        %v894 = vadd.f32 %v874, %v887
        %v895 = vadd.f32 %v875, %v889
        %s896 = sld [smem:[#allocation2 + $0x27]]
        %v897 = vstv %s896
        %v898 = vmul.f32 %v897, %v586
        %v899 = vmul.f32 %v897, %v587
        %v900 = vmul.f32 %v897, %v588
        %904 = vrot.lane.b32.xlu0 %v898, 124
        %v905 = vpop.permute.xlu0 %904
        %906 = vrot.lane.b32.xlu0 %v899, 124
        %v907 = vpop.permute.xlu0 %906
        %908 = vrot.lane.b32.xlu0 %v900, 124
        %v909 = vpop.permute.xlu0 %908
        %v913 = vadd.f32 %v893, %v905
        %v914 = vadd.f32 %v894, %v907
        %v915 = vadd.f32 %v895, %v909
        %s916 = sld [smem:[#allocation2 + $0x28]]
        %v917 = vld [vmem:[%s179 + $0x2] sm:$0xff]
        %v918 = vld [vmem:[%s179 + $0xa] sm:$0xff]
        %v919 = vld [vmem:[%s179 + $0x12] sm:$0xf]
        %v920 = vstv %s916
        %v921 = vmul.f32 %v920, %v917
        %v922 = vmul.f32 %v920, %v918
        %v923 = vmul.f32 %v920, %v919
        %v924 = vadd.f32 %v913, %v921
        %v925 = vadd.f32 %v914, %v922
        %v926 = vadd.f32 %v915, %v923
        %s927 = sld [smem:[#allocation2 + $0x29]]
        %v928 = vld [vmem:[%s197 + $0x2] sm:$0xff]
        %v929 = vld [vmem:[%s197 + $0xa] sm:$0xff]
        %v930 = vld [vmem:[%s197 + $0x12] sm:$0xf]
        %v931 = vstv %s927
        %v932 = vmul.f32 %v931, %v928
        %v933 = vmul.f32 %v931, %v929
        %v934 = vmul.f32 %v931, %v930
        %v935 = vadd.f32 %v924, %v932
        %v936 = vadd.f32 %v925, %v933
        %v937 = vadd.f32 %v926, %v934
        %s938 = sld [smem:[#allocation2 + $0x2a]]
        %v939 = vld [vmem:[%s209 + $0x2] sm:$0xff]
        %v940 = vld [vmem:[%s209 + $0xa] sm:$0xff]
        %v941 = vld [vmem:[%s209 + $0x12] sm:$0xf]
        %v942 = vstv %s938
        %v943 = vmul.f32 %v942, %v939
        %v944 = vmul.f32 %v942, %v940
        %v945 = vmul.f32 %v942, %v941
        %v946 = vadd.f32 %v935, %v943
        %v947 = vadd.f32 %v936, %v944
        %v948 = vadd.f32 %v937, %v945
        %s949 = sld [smem:[#allocation2 + $0x2b]]
        %v950 = vld [vmem:[%s221 + $0x2] sm:$0xff]
        %v951 = vld [vmem:[%s221 + $0xa] sm:$0xff]
        %v952 = vld [vmem:[%s221 + $0x12] sm:$0xf]
        %v953 = vstv %s949
        %v954 = vmul.f32 %v953, %v950
        %v955 = vmul.f32 %v953, %v951
        %v956 = vmul.f32 %v953, %v952
        %v957 = vadd.f32 %v946, %v954
        %v958 = vadd.f32 %v947, %v955
        %v959 = vadd.f32 %v948, %v956
        %s960 = sld [smem:[#allocation2 + $0x2c]]
        %v961 = vstv %s960
        %v962 = vmul.f32 %v961, %v917
        %v963 = vmul.f32 %v961, %v918
        %v964 = vmul.f32 %v961, %v919
        %968 = vrot.lane.b32.xlu0 %v962, 127
        %v969 = vpop.permute.xlu0 %968
        %970 = vrot.lane.b32.xlu0 %v963, 127
        %v971 = vpop.permute.xlu0 %970
        %972 = vrot.lane.b32.xlu0 %v964, 127
        %v973 = vpop.permute.xlu0 %972
        %v977 = vadd.f32 %v957, %v969
        %v978 = vadd.f32 %v958, %v971
        %v979 = vadd.f32 %v959, %v973
        %s980 = sld [smem:[#allocation2 + $0x2d]]
        %v981 = vstv %s980
        %v982 = vmul.f32 %v981, %v928
        %v983 = vmul.f32 %v981, %v929
        %v984 = vmul.f32 %v981, %v930
        %988 = vrot.lane.b32.xlu0 %v982, 127
        %v989 = vpop.permute.xlu0 %988
        %990 = vrot.lane.b32.xlu0 %v983, 127
        %v991 = vpop.permute.xlu0 %990
        %992 = vrot.lane.b32.xlu0 %v984, 127
        %v993 = vpop.permute.xlu0 %992
        %v997 = vadd.f32 %v977, %v989
        %v998 = vadd.f32 %v978, %v991
        %v999 = vadd.f32 %v979, %v993
        %s1000 = sld [smem:[#allocation2 + $0x2e]]
        %v1001 = vstv %s1000
        %v1002 = vmul.f32 %v1001, %v939
        %v1003 = vmul.f32 %v1001, %v940
        %v1004 = vmul.f32 %v1001, %v941
        %1008 = vrot.lane.b32.xlu0 %v1002, 127
        %v1009 = vpop.permute.xlu0 %1008
        %1010 = vrot.lane.b32.xlu0 %v1003, 127
        %v1011 = vpop.permute.xlu0 %1010
        %1012 = vrot.lane.b32.xlu0 %v1004, 127
        %v1013 = vpop.permute.xlu0 %1012
        %v1017 = vadd.f32 %v997, %v1009
        %v1018 = vadd.f32 %v998, %v1011
        %v1019 = vadd.f32 %v999, %v1013
        %s1020 = sld [smem:[#allocation2 + $0x2f]]
        %v1021 = vstv %s1020
        %v1022 = vmul.f32 %v1021, %v950
        %v1023 = vmul.f32 %v1021, %v951
        %v1024 = vmul.f32 %v1021, %v952
        %1028 = vrot.lane.b32.xlu0 %v1022, 127
        %v1029 = vpop.permute.xlu0 %1028
        %1030 = vrot.lane.b32.xlu0 %v1023, 127
        %v1031 = vpop.permute.xlu0 %1030
        %1032 = vrot.lane.b32.xlu0 %v1024, 127
        %v1033 = vpop.permute.xlu0 %1032
        %v1037 = vadd.f32 %v1017, %v1029
        %v1038 = vadd.f32 %v1018, %v1031
        %v1039 = vadd.f32 %v1019, %v1033
        %s1040 = sld [smem:[#allocation2 + $0x30]]
        %v1041 = vstv %s1040
        %v1042 = vmul.f32 %v1041, %v917
        %v1043 = vmul.f32 %v1041, %v918
        %v1044 = vmul.f32 %v1041, %v919
        %1048 = vrot.lane.b32.xlu0 %v1042, 126
        %v1049 = vpop.permute.xlu0 %1048
        %1050 = vrot.lane.b32.xlu0 %v1043, 126
        %v1051 = vpop.permute.xlu0 %1050
        %1052 = vrot.lane.b32.xlu0 %v1044, 126
        %v1053 = vpop.permute.xlu0 %1052
        %v1057 = vadd.f32 %v1037, %v1049
        %v1058 = vadd.f32 %v1038, %v1051
        %v1059 = vadd.f32 %v1039, %v1053
        %s1060 = sld [smem:[#allocation2 + $0x31]]
        %v1061 = vstv %s1060
        %v1062 = vmul.f32 %v1061, %v928
        %v1063 = vmul.f32 %v1061, %v929
        %v1064 = vmul.f32 %v1061, %v930
        %1068 = vrot.lane.b32.xlu0 %v1062, 126
        %v1069 = vpop.permute.xlu0 %1068
        %1070 = vrot.lane.b32.xlu0 %v1063, 126
        %v1071 = vpop.permute.xlu0 %1070
        %1072 = vrot.lane.b32.xlu0 %v1064, 126
        %v1073 = vpop.permute.xlu0 %1072
        %v1077 = vadd.f32 %v1057, %v1069
        %v1078 = vadd.f32 %v1058, %v1071
        %v1079 = vadd.f32 %v1059, %v1073
        %s1080 = sld [smem:[#allocation2 + $0x32]]
        %v1081 = vstv %s1080
        %v1082 = vmul.f32 %v1081, %v939
        %v1083 = vmul.f32 %v1081, %v940
        %v1084 = vmul.f32 %v1081, %v941
        %1088 = vrot.lane.b32.xlu0 %v1082, 126
        %v1089 = vpop.permute.xlu0 %1088
        %1090 = vrot.lane.b32.xlu0 %v1083, 126
        %v1091 = vpop.permute.xlu0 %1090
        %1092 = vrot.lane.b32.xlu0 %v1084, 126
        %v1093 = vpop.permute.xlu0 %1092
        %v1097 = vadd.f32 %v1077, %v1089
        %v1098 = vadd.f32 %v1078, %v1091
        %v1099 = vadd.f32 %v1079, %v1093
        %s1100 = sld [smem:[#allocation2 + $0x33]]
        %v1101 = vstv %s1100
        %v1102 = vmul.f32 %v1101, %v950
        %v1103 = vmul.f32 %v1101, %v951
        %v1104 = vmul.f32 %v1101, %v952
        %1108 = vrot.lane.b32.xlu0 %v1102, 126
        %v1109 = vpop.permute.xlu0 %1108
        %1110 = vrot.lane.b32.xlu0 %v1103, 126
        %v1111 = vpop.permute.xlu0 %1110
        %1112 = vrot.lane.b32.xlu0 %v1104, 126
        %v1113 = vpop.permute.xlu0 %1112
        %v1117 = vadd.f32 %v1097, %v1109
        %v1118 = vadd.f32 %v1098, %v1111
        %v1119 = vadd.f32 %v1099, %v1113
        %s1120 = sld [smem:[#allocation2 + $0x34]]
        %v1121 = vstv %s1120
        %v1122 = vmul.f32 %v1121, %v917
        %v1123 = vmul.f32 %v1121, %v918
        %v1124 = vmul.f32 %v1121, %v919
        %1128 = vrot.lane.b32.xlu0 %v1122, 125
        %v1129 = vpop.permute.xlu0 %1128
        %1130 = vrot.lane.b32.xlu0 %v1123, 125
        %v1131 = vpop.permute.xlu0 %1130
        %1132 = vrot.lane.b32.xlu0 %v1124, 125
        %v1133 = vpop.permute.xlu0 %1132
        %v1137 = vadd.f32 %v1117, %v1129
        %v1138 = vadd.f32 %v1118, %v1131
        %v1139 = vadd.f32 %v1119, %v1133
        %s1140 = sld [smem:[#allocation2 + $0x35]]
        %v1141 = vstv %s1140
        %v1142 = vmul.f32 %v1141, %v928
        %v1143 = vmul.f32 %v1141, %v929
        %v1144 = vmul.f32 %v1141, %v930
        %1148 = vrot.lane.b32.xlu0 %v1142, 125
        %v1149 = vpop.permute.xlu0 %1148
        %1150 = vrot.lane.b32.xlu0 %v1143, 125
        %v1151 = vpop.permute.xlu0 %1150
        %1152 = vrot.lane.b32.xlu0 %v1144, 125
        %v1153 = vpop.permute.xlu0 %1152
        %v1157 = vadd.f32 %v1137, %v1149
        %v1158 = vadd.f32 %v1138, %v1151
        %v1159 = vadd.f32 %v1139, %v1153
        %s1160 = sld [smem:[#allocation2 + $0x36]]
        %v1161 = vstv %s1160
        %v1162 = vmul.f32 %v1161, %v939
        %v1163 = vmul.f32 %v1161, %v940
        %v1164 = vmul.f32 %v1161, %v941
        %1168 = vrot.lane.b32.xlu0 %v1162, 125
        %v1169 = vpop.permute.xlu0 %1168
        %1170 = vrot.lane.b32.xlu0 %v1163, 125
        %v1171 = vpop.permute.xlu0 %1170
        %1172 = vrot.lane.b32.xlu0 %v1164, 125
        %v1173 = vpop.permute.xlu0 %1172
        %v1177 = vadd.f32 %v1157, %v1169
        %v1178 = vadd.f32 %v1158, %v1171
        %v1179 = vadd.f32 %v1159, %v1173
        %s1180 = sld [smem:[#allocation2 + $0x37]]
        %v1181 = vstv %s1180
        %v1182 = vmul.f32 %v1181, %v950
        %v1183 = vmul.f32 %v1181, %v951
        %v1184 = vmul.f32 %v1181, %v952
        %1188 = vrot.lane.b32.xlu0 %v1182, 125
        %v1189 = vpop.permute.xlu0 %1188
        %1190 = vrot.lane.b32.xlu0 %v1183, 125
        %v1191 = vpop.permute.xlu0 %1190
        %1192 = vrot.lane.b32.xlu0 %v1184, 125
        %v1193 = vpop.permute.xlu0 %1192
        %v1197 = vadd.f32 %v1177, %v1189
        %v1198 = vadd.f32 %v1178, %v1191
        %v1199 = vadd.f32 %v1179, %v1193
        %s1200 = sld [smem:[#allocation2 + $0x38]]
        %v1201 = vstv %s1200
        %v1202 = vmul.f32 %v1201, %v917
        %v1203 = vmul.f32 %v1201, %v918
        %v1204 = vmul.f32 %v1201, %v919
        %1208 = vrot.lane.b32.xlu0 %v1202, 124
        %v1209 = vpop.permute.xlu0 %1208
        %1210 = vrot.lane.b32.xlu0 %v1203, 124
        %v1211 = vpop.permute.xlu0 %1210
        %1212 = vrot.lane.b32.xlu0 %v1204, 124
        %v1213 = vpop.permute.xlu0 %1212
        %v1217 = vadd.f32 %v1197, %v1209
        %v1218 = vadd.f32 %v1198, %v1211
        %v1219 = vadd.f32 %v1199, %v1213
        %s1220 = sld [smem:[#allocation2 + $0x39]]
        %v1221 = vstv %s1220
        %v1222 = vmul.f32 %v1221, %v928
        %v1223 = vmul.f32 %v1221, %v929
        %v1224 = vmul.f32 %v1221, %v930
        %1228 = vrot.lane.b32.xlu0 %v1222, 124
        %v1229 = vpop.permute.xlu0 %1228
        %1230 = vrot.lane.b32.xlu0 %v1223, 124
        %v1231 = vpop.permute.xlu0 %1230
        %1232 = vrot.lane.b32.xlu0 %v1224, 124
        %v1233 = vpop.permute.xlu0 %1232
        %v1237 = vadd.f32 %v1217, %v1229
        %v1238 = vadd.f32 %v1218, %v1231
        %v1239 = vadd.f32 %v1219, %v1233
        %s1240 = sld [smem:[#allocation2 + $0x3a]]
        %v1241 = vstv %s1240
        %v1242 = vmul.f32 %v1241, %v939
        %v1243 = vmul.f32 %v1241, %v940
        %v1244 = vmul.f32 %v1241, %v941
        %1248 = vrot.lane.b32.xlu0 %v1242, 124
        %v1249 = vpop.permute.xlu0 %1248
        %1250 = vrot.lane.b32.xlu0 %v1243, 124
        %v1251 = vpop.permute.xlu0 %1250
        %1252 = vrot.lane.b32.xlu0 %v1244, 124
        %v1253 = vpop.permute.xlu0 %1252
        %v1257 = vadd.f32 %v1237, %v1249
        %v1258 = vadd.f32 %v1238, %v1251
        %v1259 = vadd.f32 %v1239, %v1253
        %s1260 = sld [smem:[#allocation2 + $0x3b]]
        %v1261 = vstv %s1260
        %v1262 = vmul.f32 %v1261, %v950
        %v1263 = vmul.f32 %v1261, %v951
        %v1264 = vmul.f32 %v1261, %v952
        %1268 = vrot.lane.b32.xlu0 %v1262, 124
        %v1269 = vpop.permute.xlu0 %1268
        %1270 = vrot.lane.b32.xlu0 %v1263, 124
        %v1271 = vpop.permute.xlu0 %1270
        %1272 = vrot.lane.b32.xlu0 %v1264, 124
        %v1273 = vpop.permute.xlu0 %1272
        %v1277 = vadd.f32 %v1257, %v1269
        %v1278 = vadd.f32 %v1258, %v1271
        %v1279 = vadd.f32 %v1259, %v1273
        %s1280 = sld [smem:[#allocation2 + $0x3c]]
        %v1281 = vld [vmem:[%s179 + $0x3] sm:$0xff]
        %v1282 = vld [vmem:[%s179 + $0xb] sm:$0xff]
        %v1283 = vld [vmem:[%s179 + $0x13] sm:$0xf]
        %v1284 = vstv %s1280
        %v1285 = vmul.f32 %v1284, %v1281
        %v1286 = vmul.f32 %v1284, %v1282
        %v1287 = vmul.f32 %v1284, %v1283
        %v1288 = vadd.f32 %v1277, %v1285
        %v1289 = vadd.f32 %v1278, %v1286
        %v1290 = vadd.f32 %v1279, %v1287
        %s1291 = sld [smem:[#allocation2 + $0x3d]]
        %v1292 = vld [vmem:[%s197 + $0x3] sm:$0xff]
        %v1293 = vld [vmem:[%s197 + $0xb] sm:$0xff]
        %v1294 = vld [vmem:[%s197 + $0x13] sm:$0xf]
        %v1295 = vstv %s1291
        %v1296 = vmul.f32 %v1295, %v1292
        %v1297 = vmul.f32 %v1295, %v1293
        %v1298 = vmul.f32 %v1295, %v1294
        %v1299 = vadd.f32 %v1288, %v1296
        %v1300 = vadd.f32 %v1289, %v1297
        %v1301 = vadd.f32 %v1290, %v1298
        %s1302 = sld [smem:[#allocation2 + $0x3e]]
        %v1303 = vld [vmem:[%s209 + $0x3] sm:$0xff]
        %v1304 = vld [vmem:[%s209 + $0xb] sm:$0xff]
        %v1305 = vld [vmem:[%s209 + $0x13] sm:$0xf]
        %v1306 = vstv %s1302
        %v1307 = vmul.f32 %v1306, %v1303
        %v1308 = vmul.f32 %v1306, %v1304
        %v1309 = vmul.f32 %v1306, %v1305
        %v1310 = vadd.f32 %v1299, %v1307
        %v1311 = vadd.f32 %v1300, %v1308
        %v1312 = vadd.f32 %v1301, %v1309
        %s1313 = sld [smem:[#allocation2 + $0x3f]]
        %v1314 = vld [vmem:[%s221 + $0x3] sm:$0xff]
        %v1315 = vld [vmem:[%s221 + $0xb] sm:$0xff]
        %v1316 = vld [vmem:[%s221 + $0x13] sm:$0xf]
        %v1317 = vstv %s1313
        %v1318 = vmul.f32 %v1317, %v1314
        %v1319 = vmul.f32 %v1317, %v1315
        %v1320 = vmul.f32 %v1317, %v1316
        %v1321 = vadd.f32 %v1310, %v1318
        %v1322 = vadd.f32 %v1311, %v1319
        %v1323 = vadd.f32 %v1312, %v1320
        %s1324 = sld [smem:[#allocation2 + $0x40]]
        %v1325 = vstv %s1324
        %v1326 = vmul.f32 %v1325, %v1281
        %v1327 = vmul.f32 %v1325, %v1282
        %v1328 = vmul.f32 %v1325, %v1283
        %1332 = vrot.lane.b32.xlu0 %v1326, 127
        %v1333 = vpop.permute.xlu0 %1332
        %1334 = vrot.lane.b32.xlu0 %v1327, 127
        %v1335 = vpop.permute.xlu0 %1334
        %1336 = vrot.lane.b32.xlu0 %v1328, 127
        %v1337 = vpop.permute.xlu0 %1336
        %v1341 = vadd.f32 %v1321, %v1333
        %v1342 = vadd.f32 %v1322, %v1335
        %v1343 = vadd.f32 %v1323, %v1337
        %s1344 = sld [smem:[#allocation2 + $0x41]]
        %v1345 = vstv %s1344
        %v1346 = vmul.f32 %v1345, %v1292
        %v1347 = vmul.f32 %v1345, %v1293
        %v1348 = vmul.f32 %v1345, %v1294
        %1352 = vrot.lane.b32.xlu0 %v1346, 127
        %v1353 = vpop.permute.xlu0 %1352
        %1354 = vrot.lane.b32.xlu0 %v1347, 127
        %v1355 = vpop.permute.xlu0 %1354
        %1356 = vrot.lane.b32.xlu0 %v1348, 127
        %v1357 = vpop.permute.xlu0 %1356
        %v1361 = vadd.f32 %v1341, %v1353
        %v1362 = vadd.f32 %v1342, %v1355
        %v1363 = vadd.f32 %v1343, %v1357
        %s1364 = sld [smem:[#allocation2 + $0x42]]
        %v1365 = vstv %s1364
        %v1366 = vmul.f32 %v1365, %v1303
        %v1367 = vmul.f32 %v1365, %v1304
        %v1368 = vmul.f32 %v1365, %v1305
        %1372 = vrot.lane.b32.xlu0 %v1366, 127
        %v1373 = vpop.permute.xlu0 %1372
        %1374 = vrot.lane.b32.xlu0 %v1367, 127
        %v1375 = vpop.permute.xlu0 %1374
        %1376 = vrot.lane.b32.xlu0 %v1368, 127
        %v1377 = vpop.permute.xlu0 %1376
        %v1381 = vadd.f32 %v1361, %v1373
        %v1382 = vadd.f32 %v1362, %v1375
        %v1383 = vadd.f32 %v1363, %v1377
        %s1384 = sld [smem:[#allocation2 + $0x43]]
        %v1385 = vstv %s1384
        %v1386 = vmul.f32 %v1385, %v1314
        %v1387 = vmul.f32 %v1385, %v1315
        %v1388 = vmul.f32 %v1385, %v1316
        %1392 = vrot.lane.b32.xlu0 %v1386, 127
        %v1393 = vpop.permute.xlu0 %1392
        %1394 = vrot.lane.b32.xlu0 %v1387, 127
        %v1395 = vpop.permute.xlu0 %1394
        %1396 = vrot.lane.b32.xlu0 %v1388, 127
        %v1397 = vpop.permute.xlu0 %1396
        %v1401 = vadd.f32 %v1381, %v1393
        %v1402 = vadd.f32 %v1382, %v1395
        %v1403 = vadd.f32 %v1383, %v1397
        %s1404 = sld [smem:[#allocation2 + $0x44]]
        %v1405 = vstv %s1404
        %v1406 = vmul.f32 %v1405, %v1281
        %v1407 = vmul.f32 %v1405, %v1282
        %v1408 = vmul.f32 %v1405, %v1283
        %1412 = vrot.lane.b32.xlu0 %v1406, 126
        %v1413 = vpop.permute.xlu0 %1412
        %1414 = vrot.lane.b32.xlu0 %v1407, 126
        %v1415 = vpop.permute.xlu0 %1414
        %1416 = vrot.lane.b32.xlu0 %v1408, 126
        %v1417 = vpop.permute.xlu0 %1416
        %v1421 = vadd.f32 %v1401, %v1413
        %v1422 = vadd.f32 %v1402, %v1415
        %v1423 = vadd.f32 %v1403, %v1417
        %s1424 = sld [smem:[#allocation2 + $0x45]]
        %v1425 = vstv %s1424
        %v1426 = vmul.f32 %v1425, %v1292
        %v1427 = vmul.f32 %v1425, %v1293
        %v1428 = vmul.f32 %v1425, %v1294
        %1432 = vrot.lane.b32.xlu0 %v1426, 126
        %v1433 = vpop.permute.xlu0 %1432
        %1434 = vrot.lane.b32.xlu0 %v1427, 126
        %v1435 = vpop.permute.xlu0 %1434
        %1436 = vrot.lane.b32.xlu0 %v1428, 126
        %v1437 = vpop.permute.xlu0 %1436
        %v1441 = vadd.f32 %v1421, %v1433
        %v1442 = vadd.f32 %v1422, %v1435
        %v1443 = vadd.f32 %v1423, %v1437
        %s1444 = sld [smem:[#allocation2 + $0x46]]
        %v1445 = vstv %s1444
        %v1446 = vmul.f32 %v1445, %v1303
        %v1447 = vmul.f32 %v1445, %v1304
        %v1448 = vmul.f32 %v1445, %v1305
        %1452 = vrot.lane.b32.xlu0 %v1446, 126
        %v1453 = vpop.permute.xlu0 %1452
        %1454 = vrot.lane.b32.xlu0 %v1447, 126
        %v1455 = vpop.permute.xlu0 %1454
        %1456 = vrot.lane.b32.xlu0 %v1448, 126
        %v1457 = vpop.permute.xlu0 %1456
        %v1461 = vadd.f32 %v1441, %v1453
        %v1462 = vadd.f32 %v1442, %v1455
        %v1463 = vadd.f32 %v1443, %v1457
        %s1464 = sld [smem:[#allocation2 + $0x47]]
        %v1465 = vstv %s1464
        %v1466 = vmul.f32 %v1465, %v1314
        %v1467 = vmul.f32 %v1465, %v1315
        %v1468 = vmul.f32 %v1465, %v1316
        %1472 = vrot.lane.b32.xlu0 %v1466, 126
        %v1473 = vpop.permute.xlu0 %1472
        %1474 = vrot.lane.b32.xlu0 %v1467, 126
        %v1475 = vpop.permute.xlu0 %1474
        %1476 = vrot.lane.b32.xlu0 %v1468, 126
        %v1477 = vpop.permute.xlu0 %1476
        %v1481 = vadd.f32 %v1461, %v1473
        %v1482 = vadd.f32 %v1462, %v1475
        %v1483 = vadd.f32 %v1463, %v1477
        %s1484 = sld [smem:[#allocation2 + $0x48]]
        %v1485 = vstv %s1484
        %v1486 = vmul.f32 %v1485, %v1281
        %v1487 = vmul.f32 %v1485, %v1282
        %v1488 = vmul.f32 %v1485, %v1283
        %1492 = vrot.lane.b32.xlu0 %v1486, 125
        %v1493 = vpop.permute.xlu0 %1492
        %1494 = vrot.lane.b32.xlu0 %v1487, 125
        %v1495 = vpop.permute.xlu0 %1494
        %1496 = vrot.lane.b32.xlu0 %v1488, 125
        %v1497 = vpop.permute.xlu0 %1496
        %v1501 = vadd.f32 %v1481, %v1493
        %v1502 = vadd.f32 %v1482, %v1495
        %v1503 = vadd.f32 %v1483, %v1497
        %s1504 = sld [smem:[#allocation2 + $0x49]]
        %v1505 = vstv %s1504
        %v1506 = vmul.f32 %v1505, %v1292
        %v1507 = vmul.f32 %v1505, %v1293
        %v1508 = vmul.f32 %v1505, %v1294
        %1512 = vrot.lane.b32.xlu0 %v1506, 125
        %v1513 = vpop.permute.xlu0 %1512
        %1514 = vrot.lane.b32.xlu0 %v1507, 125
        %v1515 = vpop.permute.xlu0 %1514
        %1516 = vrot.lane.b32.xlu0 %v1508, 125
        %v1517 = vpop.permute.xlu0 %1516
        %v1521 = vadd.f32 %v1501, %v1513
        %v1522 = vadd.f32 %v1502, %v1515
        %v1523 = vadd.f32 %v1503, %v1517
        %s1524 = sld [smem:[#allocation2 + $0x4a]]
        %v1525 = vstv %s1524
        %v1526 = vmul.f32 %v1525, %v1303
        %v1527 = vmul.f32 %v1525, %v1304
        %v1528 = vmul.f32 %v1525, %v1305
        %1532 = vrot.lane.b32.xlu0 %v1526, 125
        %v1533 = vpop.permute.xlu0 %1532
        %1534 = vrot.lane.b32.xlu0 %v1527, 125
        %v1535 = vpop.permute.xlu0 %1534
        %1536 = vrot.lane.b32.xlu0 %v1528, 125
        %v1537 = vpop.permute.xlu0 %1536
        %v1541 = vadd.f32 %v1521, %v1533
        %v1542 = vadd.f32 %v1522, %v1535
        %v1543 = vadd.f32 %v1523, %v1537
        %s1544 = sld [smem:[#allocation2 + $0x4b]]
        %v1545 = vstv %s1544
        %v1546 = vmul.f32 %v1545, %v1314
        %v1547 = vmul.f32 %v1545, %v1315
        %v1548 = vmul.f32 %v1545, %v1316
        %1552 = vrot.lane.b32.xlu0 %v1546, 125
        %v1553 = vpop.permute.xlu0 %1552
        %1554 = vrot.lane.b32.xlu0 %v1547, 125
        %v1555 = vpop.permute.xlu0 %1554
        %1556 = vrot.lane.b32.xlu0 %v1548, 125
        %v1557 = vpop.permute.xlu0 %1556
        %v1561 = vadd.f32 %v1541, %v1553
        %v1562 = vadd.f32 %v1542, %v1555
        %v1563 = vadd.f32 %v1543, %v1557
        %s1564 = sld [smem:[#allocation2 + $0x4c]]
        %v1565 = vstv %s1564
        %v1566 = vmul.f32 %v1565, %v1281
        %v1567 = vmul.f32 %v1565, %v1282
        %v1568 = vmul.f32 %v1565, %v1283
        %1572 = vrot.lane.b32.xlu0 %v1566, 124
        %v1573 = vpop.permute.xlu0 %1572
        %1574 = vrot.lane.b32.xlu0 %v1567, 124
        %v1575 = vpop.permute.xlu0 %1574
        %1576 = vrot.lane.b32.xlu0 %v1568, 124
        %v1577 = vpop.permute.xlu0 %1576
        %v1581 = vadd.f32 %v1561, %v1573
        %v1582 = vadd.f32 %v1562, %v1575
        %v1583 = vadd.f32 %v1563, %v1577
        %s1584 = sld [smem:[#allocation2 + $0x4d]]
        %v1585 = vstv %s1584
        %v1586 = vmul.f32 %v1585, %v1292
        %v1587 = vmul.f32 %v1585, %v1293
        %v1588 = vmul.f32 %v1585, %v1294
        %1592 = vrot.lane.b32.xlu0 %v1586, 124
        %v1593 = vpop.permute.xlu0 %1592
        %1594 = vrot.lane.b32.xlu0 %v1587, 124
        %v1595 = vpop.permute.xlu0 %1594
        %1596 = vrot.lane.b32.xlu0 %v1588, 124
        %v1597 = vpop.permute.xlu0 %1596
        %v1601 = vadd.f32 %v1581, %v1593
        %v1602 = vadd.f32 %v1582, %v1595
        %v1603 = vadd.f32 %v1583, %v1597
        %s1604 = sld [smem:[#allocation2 + $0x4e]]
        %v1605 = vstv %s1604
        %v1606 = vmul.f32 %v1605, %v1303
        %v1607 = vmul.f32 %v1605, %v1304
        %v1608 = vmul.f32 %v1605, %v1305
        %1612 = vrot.lane.b32.xlu0 %v1606, 124
        %v1613 = vpop.permute.xlu0 %1612
        %1614 = vrot.lane.b32.xlu0 %v1607, 124
        %v1615 = vpop.permute.xlu0 %1614
        %1616 = vrot.lane.b32.xlu0 %v1608, 124
        %v1617 = vpop.permute.xlu0 %1616
        %v1621 = vadd.f32 %v1601, %v1613
        %v1622 = vadd.f32 %v1602, %v1615
        %v1623 = vadd.f32 %v1603, %v1617
        %s1624 = sld [smem:[#allocation2 + $0x4f]]
        %v1625 = vstv %s1624
        %v1626 = vmul.f32 %v1625, %v1314
        %v1627 = vmul.f32 %v1625, %v1315
        %v1628 = vmul.f32 %v1625, %v1316
        %1632 = vrot.lane.b32.xlu0 %v1626, 124
        %v1633 = vpop.permute.xlu0 %1632
        %1634 = vrot.lane.b32.xlu0 %v1627, 124
        %v1635 = vpop.permute.xlu0 %1634
        %1636 = vrot.lane.b32.xlu0 %v1628, 124
        %v1637 = vpop.permute.xlu0 %1636
        %v1641 = vadd.f32 %v1621, %v1633
        %v1642 = vadd.f32 %v1622, %v1635
        %v1643 = vadd.f32 %v1623, %v1637
        %s1644 = sld [smem:[#allocation2 + $0x50]]
        %v1645 = vld [vmem:[%s179 + $0x4] sm:$0xff]
        %v1646 = vld [vmem:[%s179 + $0xc] sm:$0xff]
        %v1647 = vld [vmem:[%s179 + $0x14] sm:$0xf]
        %v1648 = vstv %s1644
        %v1649 = vmul.f32 %v1648, %v1645
        %v1650 = vmul.f32 %v1648, %v1646
        %v1651 = vmul.f32 %v1648, %v1647
        %v1652 = vadd.f32 %v1641, %v1649
        %v1653 = vadd.f32 %v1642, %v1650
        %v1654 = vadd.f32 %v1643, %v1651
        %s1655 = sld [smem:[#allocation2 + $0x51]]
        %v1656 = vld [vmem:[%s197 + $0x4] sm:$0xff]
        %v1657 = vld [vmem:[%s197 + $0xc] sm:$0xff]
        %v1658 = vld [vmem:[%s197 + $0x14] sm:$0xf]
        %v1659 = vstv %s1655
        %v1660 = vmul.f32 %v1659, %v1656
        %v1661 = vmul.f32 %v1659, %v1657
        %v1662 = vmul.f32 %v1659, %v1658
        %v1663 = vadd.f32 %v1652, %v1660
        %v1664 = vadd.f32 %v1653, %v1661
        %v1665 = vadd.f32 %v1654, %v1662
        %s1666 = sld [smem:[#allocation2 + $0x52]]
        %v1667 = vld [vmem:[%s209 + $0x4] sm:$0xff]
        %v1668 = vld [vmem:[%s209 + $0xc] sm:$0xff]
        %v1669 = vld [vmem:[%s209 + $0x14] sm:$0xf]
        %v1670 = vstv %s1666
        %v1671 = vmul.f32 %v1670, %v1667
        %v1672 = vmul.f32 %v1670, %v1668
        %v1673 = vmul.f32 %v1670, %v1669
        %v1674 = vadd.f32 %v1663, %v1671
        %v1675 = vadd.f32 %v1664, %v1672
        %v1676 = vadd.f32 %v1665, %v1673
        %s1677 = sld [smem:[#allocation2 + $0x53]]
        %v1678 = vld [vmem:[%s221 + $0x4] sm:$0xff]
        %v1679 = vld [vmem:[%s221 + $0xc] sm:$0xff]
        %v1680 = vld [vmem:[%s221 + $0x14] sm:$0xf]
        %v1681 = vstv %s1677
        %v1682 = vmul.f32 %v1681, %v1678
        %v1683 = vmul.f32 %v1681, %v1679
        %v1684 = vmul.f32 %v1681, %v1680
        %v1685 = vadd.f32 %v1674, %v1682
        %v1686 = vadd.f32 %v1675, %v1683
        %v1687 = vadd.f32 %v1676, %v1684
        %s1688 = sld [smem:[#allocation2 + $0x54]]
        %v1689 = vstv %s1688
        %v1690 = vmul.f32 %v1689, %v1645
        %v1691 = vmul.f32 %v1689, %v1646
        %v1692 = vmul.f32 %v1689, %v1647
        %1696 = vrot.lane.b32.xlu0 %v1690, 127
        %v1697 = vpop.permute.xlu0 %1696
        %1698 = vrot.lane.b32.xlu0 %v1691, 127
        %v1699 = vpop.permute.xlu0 %1698
        %1700 = vrot.lane.b32.xlu0 %v1692, 127
        %v1701 = vpop.permute.xlu0 %1700
        %v1705 = vadd.f32 %v1685, %v1697
        %v1706 = vadd.f32 %v1686, %v1699
        %v1707 = vadd.f32 %v1687, %v1701
        %s1708 = sld [smem:[#allocation2 + $0x55]]
        %v1709 = vstv %s1708
        %v1710 = vmul.f32 %v1709, %v1656
        %v1711 = vmul.f32 %v1709, %v1657
        %v1712 = vmul.f32 %v1709, %v1658
        %1716 = vrot.lane.b32.xlu0 %v1710, 127
        %v1717 = vpop.permute.xlu0 %1716
        %1718 = vrot.lane.b32.xlu0 %v1711, 127
        %v1719 = vpop.permute.xlu0 %1718
        %1720 = vrot.lane.b32.xlu0 %v1712, 127
        %v1721 = vpop.permute.xlu0 %1720
        %v1725 = vadd.f32 %v1705, %v1717
        %v1726 = vadd.f32 %v1706, %v1719
        %v1727 = vadd.f32 %v1707, %v1721
        %s1728 = sld [smem:[#allocation2 + $0x56]]
        %v1729 = vstv %s1728
        %v1730 = vmul.f32 %v1729, %v1667
        %v1731 = vmul.f32 %v1729, %v1668
        %v1732 = vmul.f32 %v1729, %v1669
        %1736 = vrot.lane.b32.xlu0 %v1730, 127
        %v1737 = vpop.permute.xlu0 %1736
        %1738 = vrot.lane.b32.xlu0 %v1731, 127
        %v1739 = vpop.permute.xlu0 %1738
        %1740 = vrot.lane.b32.xlu0 %v1732, 127
        %v1741 = vpop.permute.xlu0 %1740
        %v1745 = vadd.f32 %v1725, %v1737
        %v1746 = vadd.f32 %v1726, %v1739
        %v1747 = vadd.f32 %v1727, %v1741
        %s1748 = sld [smem:[#allocation2 + $0x57]]
        %v1749 = vstv %s1748
        %v1750 = vmul.f32 %v1749, %v1678
        %v1751 = vmul.f32 %v1749, %v1679
        %v1752 = vmul.f32 %v1749, %v1680
        %1756 = vrot.lane.b32.xlu0 %v1750, 127
        %v1757 = vpop.permute.xlu0 %1756
        %1758 = vrot.lane.b32.xlu0 %v1751, 127
        %v1759 = vpop.permute.xlu0 %1758
        %1760 = vrot.lane.b32.xlu0 %v1752, 127
        %v1761 = vpop.permute.xlu0 %1760
        %v1765 = vadd.f32 %v1745, %v1757
        %v1766 = vadd.f32 %v1746, %v1759
        %v1767 = vadd.f32 %v1747, %v1761
        %s1768 = sld [smem:[#allocation2 + $0x58]]
        %v1769 = vstv %s1768
        %v1770 = vmul.f32 %v1769, %v1645
        %v1771 = vmul.f32 %v1769, %v1646
        %v1772 = vmul.f32 %v1769, %v1647
        %1776 = vrot.lane.b32.xlu0 %v1770, 126
        %v1777 = vpop.permute.xlu0 %1776
        %1778 = vrot.lane.b32.xlu0 %v1771, 126
        %v1779 = vpop.permute.xlu0 %1778
        %1780 = vrot.lane.b32.xlu0 %v1772, 126
        %v1781 = vpop.permute.xlu0 %1780
        %v1785 = vadd.f32 %v1765, %v1777
        %v1786 = vadd.f32 %v1766, %v1779
        %v1787 = vadd.f32 %v1767, %v1781
        %s1788 = sld [smem:[#allocation2 + $0x59]]
        %v1789 = vstv %s1788
        %v1790 = vmul.f32 %v1789, %v1656
        %v1791 = vmul.f32 %v1789, %v1657
        %v1792 = vmul.f32 %v1789, %v1658
        %1796 = vrot.lane.b32.xlu0 %v1790, 126
        %v1797 = vpop.permute.xlu0 %1796
        %1798 = vrot.lane.b32.xlu0 %v1791, 126
        %v1799 = vpop.permute.xlu0 %1798
        %1800 = vrot.lane.b32.xlu0 %v1792, 126
        %v1801 = vpop.permute.xlu0 %1800
        %v1805 = vadd.f32 %v1785, %v1797
        %v1806 = vadd.f32 %v1786, %v1799
        %v1807 = vadd.f32 %v1787, %v1801
        %s1808 = sld [smem:[#allocation2 + $0x5a]]
        %v1809 = vstv %s1808
        %v1810 = vmul.f32 %v1809, %v1667
        %v1811 = vmul.f32 %v1809, %v1668
        %v1812 = vmul.f32 %v1809, %v1669
        %1816 = vrot.lane.b32.xlu0 %v1810, 126
        %v1817 = vpop.permute.xlu0 %1816
        %1818 = vrot.lane.b32.xlu0 %v1811, 126
        %v1819 = vpop.permute.xlu0 %1818
        %1820 = vrot.lane.b32.xlu0 %v1812, 126
        %v1821 = vpop.permute.xlu0 %1820
        %v1825 = vadd.f32 %v1805, %v1817
        %v1826 = vadd.f32 %v1806, %v1819
        %v1827 = vadd.f32 %v1807, %v1821
        %s1828 = sld [smem:[#allocation2 + $0x5b]]
        %v1829 = vstv %s1828
        %v1830 = vmul.f32 %v1829, %v1678
        %v1831 = vmul.f32 %v1829, %v1679
        %v1832 = vmul.f32 %v1829, %v1680
        %1836 = vrot.lane.b32.xlu0 %v1830, 126
        %v1837 = vpop.permute.xlu0 %1836
        %1838 = vrot.lane.b32.xlu0 %v1831, 126
        %v1839 = vpop.permute.xlu0 %1838
        %1840 = vrot.lane.b32.xlu0 %v1832, 126
        %v1841 = vpop.permute.xlu0 %1840
        %v1845 = vadd.f32 %v1825, %v1837
        %v1846 = vadd.f32 %v1826, %v1839
        %v1847 = vadd.f32 %v1827, %v1841
        %s1848 = sld [smem:[#allocation2 + $0x5c]]
        %v1849 = vstv %s1848
        %v1850 = vmul.f32 %v1849, %v1645
        %v1851 = vmul.f32 %v1849, %v1646
        %v1852 = vmul.f32 %v1849, %v1647
        %1856 = vrot.lane.b32.xlu0 %v1850, 125
        %v1857 = vpop.permute.xlu0 %1856
        %1858 = vrot.lane.b32.xlu0 %v1851, 125
        %v1859 = vpop.permute.xlu0 %1858
        %1860 = vrot.lane.b32.xlu0 %v1852, 125
        %v1861 = vpop.permute.xlu0 %1860
        %v1865 = vadd.f32 %v1845, %v1857
        %v1866 = vadd.f32 %v1846, %v1859
        %v1867 = vadd.f32 %v1847, %v1861
        %s1868 = sld [smem:[#allocation2 + $0x5d]]
        %v1869 = vstv %s1868
        %v1870 = vmul.f32 %v1869, %v1656
        %v1871 = vmul.f32 %v1869, %v1657
        %v1872 = vmul.f32 %v1869, %v1658
        %1876 = vrot.lane.b32.xlu0 %v1870, 125
        %v1877 = vpop.permute.xlu0 %1876
        %1878 = vrot.lane.b32.xlu0 %v1871, 125
        %v1879 = vpop.permute.xlu0 %1878
        %1880 = vrot.lane.b32.xlu0 %v1872, 125
        %v1881 = vpop.permute.xlu0 %1880
        %v1885 = vadd.f32 %v1865, %v1877
        %v1886 = vadd.f32 %v1866, %v1879
        %v1887 = vadd.f32 %v1867, %v1881
        %s1888 = sld [smem:[#allocation2 + $0x5e]]
        %v1889 = vstv %s1888
        %v1890 = vmul.f32 %v1889, %v1667
        %v1891 = vmul.f32 %v1889, %v1668
        %v1892 = vmul.f32 %v1889, %v1669
        %1896 = vrot.lane.b32.xlu0 %v1890, 125
        %v1897 = vpop.permute.xlu0 %1896
        %1898 = vrot.lane.b32.xlu0 %v1891, 125
        %v1899 = vpop.permute.xlu0 %1898
        %1900 = vrot.lane.b32.xlu0 %v1892, 125
        %v1901 = vpop.permute.xlu0 %1900
        %v1905 = vadd.f32 %v1885, %v1897
        %v1906 = vadd.f32 %v1886, %v1899
        %v1907 = vadd.f32 %v1887, %v1901
        %s1908 = sld [smem:[#allocation2 + $0x5f]]
        %v1909 = vstv %s1908
        %v1910 = vmul.f32 %v1909, %v1678
        %v1911 = vmul.f32 %v1909, %v1679
        %v1912 = vmul.f32 %v1909, %v1680
        %1916 = vrot.lane.b32.xlu0 %v1910, 125
        %v1917 = vpop.permute.xlu0 %1916
        %1918 = vrot.lane.b32.xlu0 %v1911, 125
        %v1919 = vpop.permute.xlu0 %1918
        %1920 = vrot.lane.b32.xlu0 %v1912, 125
        %v1921 = vpop.permute.xlu0 %1920
        %v1925 = vadd.f32 %v1905, %v1917
        %v1926 = vadd.f32 %v1906, %v1919
        %v1927 = vadd.f32 %v1907, %v1921
        %s1928 = sld [smem:[#allocation2 + $0x60]]
        %v1929 = vstv %s1928
        %v1930 = vmul.f32 %v1929, %v1645
        %v1931 = vmul.f32 %v1929, %v1646
        %v1932 = vmul.f32 %v1929, %v1647
        %1936 = vrot.lane.b32.xlu0 %v1930, 124
        %v1937 = vpop.permute.xlu0 %1936
        %1938 = vrot.lane.b32.xlu0 %v1931, 124
        %v1939 = vpop.permute.xlu0 %1938
        %1940 = vrot.lane.b32.xlu0 %v1932, 124
        %v1941 = vpop.permute.xlu0 %1940
        %v1945 = vadd.f32 %v1925, %v1937
        %v1946 = vadd.f32 %v1926, %v1939
        %v1947 = vadd.f32 %v1927, %v1941
        %s1948 = sld [smem:[#allocation2 + $0x61]]
        %v1949 = vstv %s1948
        %v1950 = vmul.f32 %v1949, %v1656
        %v1951 = vmul.f32 %v1949, %v1657
        %v1952 = vmul.f32 %v1949, %v1658
        %1956 = vrot.lane.b32.xlu0 %v1950, 124
        %v1957 = vpop.permute.xlu0 %1956
        %1958 = vrot.lane.b32.xlu0 %v1951, 124
        %v1959 = vpop.permute.xlu0 %1958
        %1960 = vrot.lane.b32.xlu0 %v1952, 124
        %v1961 = vpop.permute.xlu0 %1960
        %v1965 = vadd.f32 %v1945, %v1957
        %v1966 = vadd.f32 %v1946, %v1959
        %v1967 = vadd.f32 %v1947, %v1961
        %s1968 = sld [smem:[#allocation2 + $0x62]]
        %v1969 = vstv %s1968
        %v1970 = vmul.f32 %v1969, %v1667
        %v1971 = vmul.f32 %v1969, %v1668
        %v1972 = vmul.f32 %v1969, %v1669
        %1976 = vrot.lane.b32.xlu0 %v1970, 124
        %v1977 = vpop.permute.xlu0 %1976
        %1978 = vrot.lane.b32.xlu0 %v1971, 124
        %v1979 = vpop.permute.xlu0 %1978
        %1980 = vrot.lane.b32.xlu0 %v1972, 124
        %v1981 = vpop.permute.xlu0 %1980
        %v1985 = vadd.f32 %v1965, %v1977
        %v1986 = vadd.f32 %v1966, %v1979
        %v1987 = vadd.f32 %v1967, %v1981
        %s1988 = sld [smem:[#allocation2 + $0x63]]
        %v1989 = vstv %s1988
        %v1990 = vmul.f32 %v1989, %v1678
        %v1991 = vmul.f32 %v1989, %v1679
        %v1992 = vmul.f32 %v1989, %v1680
        %1996 = vrot.lane.b32.xlu0 %v1990, 124
        %v1997 = vpop.permute.xlu0 %1996
        %1998 = vrot.lane.b32.xlu0 %v1991, 124
        %v1999 = vpop.permute.xlu0 %1998
        %2000 = vrot.lane.b32.xlu0 %v1992, 124
        %v2001 = vpop.permute.xlu0 %2000
        %v2005 = vadd.f32 %v1985, %v1997
        %v2006 = vadd.f32 %v1986, %v1999
        %v2007 = vadd.f32 %v1987, %v2001
        %v2008 = vld [vmem:[%s2] sm:$0xff]
        %v2009 = vld [vmem:[%s2 + $0x8] sm:$0xff]
        %v2010 = vld [vmem:[%s2 + $0x10] sm:$0xf]
        %v2011 = vadd.f32 %v2005, %v2008
        %v2012 = vadd.f32 %v2006, %v2009
        %v2013 = vadd.f32 %v2007, %v2010
        %vm2014 = vcmask 162816
        %2015 = vst.msk [vmem:[%s184] sm:$0xff] %vm2014, %v2011
        %2016 = vst.msk [vmem:[%s184 + $0x8] sm:$0xff] %vm2014, %v2012
        %vm2017 = vcmask 158720
        %2018 = vst.msk [vmem:[%s184 + $0x10] sm:$0xf] %vm2017, %v2013
        %p2019 = scmp.lt.s32.totalorder %s15, 1
        %s2020 = scalar_select %p2019, %s15, 1
        %s2021 = smul.addr %s2020, 3
        %s2022 = smul.addr %s2021, 8
        %s2023 = scalar_lea.vmem %s3, %s2022
        // Predicated region
        $region37: #{decoder_forward.1} parent=31 // pred_check
          %p2024 = pneg %p101
        $region38: #{decoder_forward.1} parent=31 // pred_check_branch
          %2026 = sbr.rel (%p2024) target = $region40
        $region39: #{decoder_forward.1} parent=31 // pred_region
          _
        $region40: #{decoder_forward.1} parent=31 // pred_fallthru
          _
      $region32: #{decoder_forward.1} parent=5 // pred_fallthru
        _
      %p2027 = scmp.le.s32.totalorder 2, %s10
      // Predicated region
      $region41: #{decoder_forward.1} parent=5 // pred_check
        %p2028 = pneg %p2027
      $region42: #{decoder_forward.1} parent=5 // pred_check_branch
        %2030 = sbr.rel (%p2028) target = $region44
      $region43: #{decoder_forward.1} parent=5 // pred_region
        %s2031 = ssub.s32 %s10, 2
        // Predicated region
        $region45: #{decoder_forward.1} parent=43 // pred_check
          %p2032 = pneg %p107
        $region46: #{decoder_forward.1} parent=43 // pred_check_branch
          %2034 = sbr.rel (%p2032) target = $region48
        $region47: #{decoder_forward.1} parent=43 // pred_region
          %p2035 = scmp.lt.s32.totalorder %s16, 1
          %s2036 = scalar_select %p2035, %s16, 1
          %s2037 = smul.addr %s2036, 3
          %s2038 = smul.addr %s2037, 8
          %s2039 = scalar_lea.vmem %s3, %s2038
        $region48: #{decoder_forward.1} parent=43 // pred_fallthru
          _
      $region44: #{decoder_forward.1} parent=5 // pred_fallthru
        _
    $region6: #{decoder_forward.1} parent=1 // loop_footer
      %s14 = sadd.s32 1, %s10
    $region7: #{decoder_forward.1} parent=1 // loop_footer_branch
      %9 = sbr.rel target = $region3
    $region8: #{decoder_forward.1} parent=1 // loop_exit
      _
    %2040 = vsyncpa [#allocation3], 1
    %s2041 = scalar_lea.sflag [#allocation3], 1
    %2042 = vsyncpa %s2041, 1

</llo_original>
